<compile_context>
chip_gen: v7x
topology: tpu7x:2x2x1
jax: 0.10.0
libtpu: 0.0.40
codegen_flags: <defaults>
</compile_context>

<pallas_src>
import functools

import numpy as np
import jax
import jax.numpy as jnp
from jax.experimental import pallas as pl
from jax.experimental.pallas import tpu as pltpu

HIDDEN_SIZE = 5
INPUT_SIZE = 5
NUM_CLASSES = 1
NUM_LAYERS = 1          # module hard-codes a single nn.LSTM layer
SEQ_LENGTH = 7
BATCH = 2

# Padded (TPU-friendly) dims.
BP = 8      # batch        -> sublanes
DP = 8      # input dim    -> contraction lanes for x @ W_ih   (was 128)
HC = 8      # hidden dim   -> contraction lanes for h @ W_hh   (was 128)
HP = 128    # per-gate output slab width (keeps gate extracts vreg-aligned)
CP = 128    # num_classes  -> output lanes (lane-dense store)


def _lstm_fc_kernel(x_ref,      # (T*BP, DP)   VMEM, time-major, flattened
                    w_ih_ref,   # (DP, 4*HP)   VMEM, gate slabs i|f|g|o
                    w_hh_ref,   # (HC, 4*HP)   VMEM, gate slabs i|f|g|o
                    b_ref,      # (1, 4*HP)    VMEM, b_ih + b_hh
                    w_fc_ref,   # (HC, CP)     VMEM
                    b_fc_ref,   # (1, CP)      VMEM
                    out_ref,    # (BP, CP)     VMEM, lane-dense output
                    xproj_ref,  # (T*BP, 4*HP) VMEM scratch
                    *, T):
    # --- prologue: ONE input-projection matmul for all timesteps (+ bias),
    # written to VMEM scratch so it never pins vregs across the recurrence. ---
    xproj_ref[...] = (
        jnp.dot(x_ref[...], w_ih_ref[...], preferred_element_type=jnp.float32)
        + b_ref[...])

    # --- recurrence: h, c are tiny (BP, HC) loop-carried vregs. ---
    h = jnp.zeros((BP, HC), jnp.float32)
    c = jnp.zeros((BP, HC), jnp.float32)

    # T is small & static: unroll the sequential dependence on h, c.
    for t in range(T):
        # W_hh (only 4 vregs) is read at the call site, never hoisted/pinned.
        gates = xproj_ref[t * BP:(t + 1) * BP, :] + jnp.dot(
            h, w_hh_ref[...], preferred_element_type=jnp.float32)  # (BP, 4*HP)
        # Vreg-aligned, lane-offset-0 extracts of the first HC lanes per slab.
        # PyTorch gate order inside the slabs: i, f, g, o.
        i_g = jax.nn.sigmoid(gates[:, 0 * HP:0 * HP + HC])
        f_g = jax.nn.sigmoid(gates[:, 1 * HP:1 * HP + HC])
        g_g = jnp.tanh(gates[:, 2 * HP:2 * HP + HC])
        o_g = jax.nn.sigmoid(gates[:, 3 * HP:3 * HP + HC])
        c = f_g * c + i_g * g_g
        h = o_g * jnp.tanh(c)

    # --- FC head, lane-dense (BP, CP) store. ---
    out_ref[...] = (
        jnp.dot(h, w_fc_ref[...], preferred_element_type=jnp.float32)
        + b_fc_ref[...])


def make_padded_params(w_ih, w_hh, b_ih, b_hh, w_fc, b_fc):
    """One-time padding/layout of PyTorch-style parameters (NumPy, outside jit).

    PyTorch layouts: w_ih (4H, D), w_hh (4H, H), b_* (4H,), w_fc (C, H),
    b_fc (C,); gates stacked along dim 0 in order (i, f, g, o).
    """
    w_ih = np.asarray(w_ih, np.float32)
    w_hh = np.asarray(w_hh, np.float32)
    b = np.asarray(b_ih, np.float32) + np.asarray(b_hh, np.float32)
    w_fc = np.asarray(w_fc, np.float32)
    b_fc = np.asarray(b_fc, np.float32)

    H = w_hh.shape[1]
    D = w_ih.shape[1]
    C = w_fc.shape[0]
    assert D <= DP and H <= HC and H <= HP and C <= CP

    w_ih_p = np.zeros((DP, 4 * HP), np.float32)
    w_hh_p = np.zeros((HC, 4 * HP), np.float32)
    b_p = np.zeros((1, 4 * HP), np.float32)
    for k in range(4):                     # gate k in PyTorch order i, f, g, o
        blk = slice(k * H, (k + 1) * H)
        w_ih_p[:D, k * HP:k * HP + H] = w_ih[blk, :].T
        w_hh_p[:H, k * HP:k * HP + H] = w_hh[blk, :].T
        b_p[0, k * HP:k * HP + H] = b[blk]

    w_fc_p = np.zeros((HC, CP), np.float32)
    w_fc_p[:H, :C] = w_fc.T
    b_fc_p = np.zeros((1, CP), np.float32)
    b_fc_p[0, :C] = b_fc

    return tuple(jnp.asarray(a) for a in
                 (w_ih_p, w_hh_p, b_p, w_fc_p, b_fc_p))


@functools.partial(jax.jit, static_argnums=(6,))
def _forward(x, w_ih_p, w_hh_p, b_p, w_fc_p, b_fc_p, num_classes):
    B, T, D = x.shape
    f32 = jnp.float32
    # batch_first -> time-major, pad batch to BP sublanes / features to DP
    # lanes, flatten to (T*BP, DP) so the kernel does ONE x-projection matmul.
    x_tm = jnp.transpose(x.astype(f32), (1, 0, 2))                 # (T, B, D)
    x_pad = jnp.zeros((T, BP, DP), f32).at[:, :B, :D].set(x_tm)
    x_flat = x_pad.reshape(T * BP, DP)

    out_p = pl.pallas_call(
        functools.partial(_lstm_fc_kernel, T=T),
        out_shape=jax.ShapeDtypeStruct((BP, CP), jnp.float32),
        in_specs=[pl.BlockSpec(memory_space=pltpu.MemorySpace.VMEM)] * 6,
        out_specs=pl.BlockSpec(memory_space=pltpu.MemorySpace.VMEM),
        scratch_shapes=[pltpu.VMEM((T * BP, 4 * HP), jnp.float32)],
    )(x_flat, w_ih_p, w_hh_p, b_p, w_fc_p, b_fc_p)
    return out_p[:B, :num_classes]


def lstm_forward(x, padded_params, num_classes=NUM_CLASSES):
    """x: (B, T, D) float32 (batch_first); padded_params from make_padded_params."""
    return _forward(x, *padded_params, num_classes)


def _reference(x, w_ih, w_hh, b_ih, b_hh, w_fc, b_fc):
    """Plain-JAX reference mirroring torch.nn.LSTM + Linear (f32, HIGHEST)."""
    hi = jax.lax.Precision.HIGHEST
    B, T, D = x.shape
    H = w_hh.shape[1]
    h = jnp.zeros((B, H), jnp.float32)
    c = jnp.zeros((B, H), jnp.float32)
    for t in range(T):
        g = (jnp.dot(x[:, t, :], w_ih.T, precision=hi) + b_ih
             + jnp.dot(h, w_hh.T, precision=hi) + b_hh)
        i = jax.nn.sigmoid(g[:, 0 * H:1 * H])
        f = jax.nn.sigmoid(g[:, 1 * H:2 * H])
        gg = jnp.tanh(g[:, 2 * H:3 * H])
        o = jax.nn.sigmoid(g[:, 3 * H:4 * H])
        c = f * c + i * gg
        h = o * jnp.tanh(c)
    return jnp.dot(h, w_fc.T, precision=hi) + b_fc


if __name__ == "__main__":
    key = jax.random.PRNGKey(0)
    ks = jax.random.split(key, 8)

    H, D, C = HIDDEN_SIZE, INPUT_SIZE, NUM_CLASSES
    bound = float(1.0 / np.sqrt(np.float32(H)))   # PyTorch default init range

    # LSTM parameters (PyTorch layout: gate order i, f, g, o stacked on dim 0)
    w_ih = jax.random.uniform(ks[0], (4 * H, D), jnp.float32, -bound, bound)
    w_hh = jax.random.uniform(ks[1], (4 * H, H), jnp.float32, -bound, bound)
    b_ih = jax.random.uniform(ks[2], (4 * H,), jnp.float32, -bound, bound)
    b_hh = jax.random.uniform(ks[3], (4 * H,), jnp.float32, -bound, bound)
    # Linear head
    w_fc = jax.random.uniform(ks[4], (C, H), jnp.float32, -bound, bound)
    b_fc = jax.random.uniform(ks[5], (C,), jnp.float32, -bound, bound)

    # Input: (batch, seq, input_size), values in [0, 1] (as if MinMaxScaler'd)
    x = jax.random.uniform(ks[6], (BATCH, SEQ_LENGTH, D), jnp.float32, 0.0, 1.0)

    padded = make_padded_params(w_ih, w_hh, b_ih, b_hh, w_fc, b_fc)  # once
    out = lstm_forward(x, padded, NUM_CLASSES)
    out = jax.block_until_ready(out)

    ref = _reference(x, w_ih, w_hh, b_ih, b_hh, w_fc, b_fc)
    assert out.shape == (BATCH, NUM_CLASSES), out.shape
    # Tolerance leaves headroom for MXU multi-pass f32 rounding vs. the
    # HIGHEST-precision XLA reference; structural bugs would be >> 1e-2.
    assert jnp.allclose(out, ref, atol=1e-3, rtol=1e-3), (out, ref)

    print("KERNEL_OK")
</pallas_src>

<mosaic_0001>
module attributes {stable_mosaic.version = 11 : i64} {
  func.func @_lstm_fc_kernel(%arg0: memref<56x8xf32, #tpu.memory_space<vmem>>, %arg1: memref<8x512xf32, #tpu.memory_space<vmem>>, %arg2: memref<8x512xf32, #tpu.memory_space<vmem>>, %arg3: memref<1x512xf32, #tpu.memory_space<vmem>>, %arg4: memref<8x128xf32, #tpu.memory_space<vmem>>, %arg5: memref<1x128xf32, #tpu.memory_space<vmem>>, %arg6: memref<8x128xf32, #tpu.memory_space<vmem>>, %arg7: memref<56x512xf32, #tpu.memory_space<vmem>>) attributes {dimension_semantics = [], scalar_prefetch = 0 : i64, scratch_operands = 1 : i64, tpu.core_type = #tpu.core_type<tc>} {
    %c0 = arith.constant 0 : index
    %c0_0 = arith.constant 0 : index
    %0 = vector.load %arg0[%c0, %c0_0] : memref<56x8xf32, #tpu.memory_space<vmem>>, vector<56x8xf32>
    %c0_1 = arith.constant 0 : index
    %c0_2 = arith.constant 0 : index
    %1 = vector.load %arg1[%c0_1, %c0_2] : memref<8x512xf32, #tpu.memory_space<vmem>>, vector<8x512xf32>
    %cst = arith.constant dense<0.000000e+00> : vector<56x512xf32>
    %2 = tpu.matmul %0, %1, %cst {dimension_numbers = #tpu.dot_dimension_numbers<[1], [0], [0], [1], [0, 0, 1, 1], [], []>} : vector<56x8xf32>, vector<8x512xf32>, vector<56x512xf32> -> vector<56x512xf32>
    %c0_3 = arith.constant 0 : index
    %c0_4 = arith.constant 0 : index
    %3 = vector.load %arg3[%c0_3, %c0_4] : memref<1x512xf32, #tpu.memory_space<vmem>>, vector<1x512xf32>
    %4 = vector.broadcast %3 : vector<1x512xf32> to vector<56x512xf32>
    %5 = arith.addf %2, %4 : vector<56x512xf32>
    %c0_5 = arith.constant 0 : index
    %c0_6 = arith.constant 0 : index
    %6 = vector.load %arg7[%c0_5, %c0_6] : memref<56x512xf32, #tpu.memory_space<vmem>>, vector<56x512xf32>
    tpu.vector_store %arg7[%c0_5, %c0_6], %5 {strides = array<i32>} : memref<56x512xf32, #tpu.memory_space<vmem>>, vector<56x512xf32>,
    %cst_7 = arith.constant 0.000000e+00 : f32
    %7 = vector.broadcast %cst_7 : f32 to vector<8x8xf32>
    %cst_8 = arith.constant 0.000000e+00 : f32
    %8 = vector.broadcast %cst_8 : f32 to vector<8x8xf32>
    %c0_9 = arith.constant 0 : index
    %c0_10 = arith.constant 0 : index
    %9 = vector.load %arg7[%c0_9, %c0_10] : memref<56x512xf32, #tpu.memory_space<vmem>>, vector<8x512xf32>
    %c0_11 = arith.constant 0 : index
    %c0_12 = arith.constant 0 : index
    %10 = vector.load %arg2[%c0_11, %c0_12] : memref<8x512xf32, #tpu.memory_space<vmem>>, vector<8x512xf32>
    %cst_13 = arith.constant dense<0.000000e+00> : vector<8x512xf32>
    %11 = tpu.matmul %7, %10, %cst_13 {dimension_numbers = #tpu.dot_dimension_numbers<[1], [0], [0], [1], [0, 0, 1, 1], [], []>} : vector<8x8xf32>, vector<8x512xf32>, vector<8x512xf32> -> vector<8x512xf32>
    %12 = arith.addf %9, %11 : vector<8x512xf32>
    %13 = vector.extract_strided_slice %12 {offsets = [0, 0], sizes = [8, 8], strides = [1, 1]} : vector<8x512xf32> to vector<8x8xf32>
    %14 = arith.negf %13 : vector<8x8xf32>
    %15 = math.exp %14 : vector<8x8xf32>
    %cst_14 = arith.constant 1.000000e+00 : f32
    %16 = vector.broadcast %cst_14 : f32 to vector<8x8xf32>
    %17 = arith.addf %16, %15 : vector<8x8xf32>
    %18 = arith.divf %16, %17 : vector<8x8xf32>
    %19 = vector.extract_strided_slice %12 {offsets = [0, 128], sizes = [8, 8], strides = [1, 1]} : vector<8x512xf32> to vector<8x8xf32>
    %20 = arith.negf %19 : vector<8x8xf32>
    %21 = math.exp %20 : vector<8x8xf32>
    %cst_15 = arith.constant 1.000000e+00 : f32
    %22 = vector.broadcast %cst_15 : f32 to vector<8x8xf32>
    %23 = arith.addf %22, %21 : vector<8x8xf32>
    %24 = arith.divf %22, %23 : vector<8x8xf32>
    %25 = vector.extract_strided_slice %12 {offsets = [0, 256], sizes = [8, 8], strides = [1, 1]} : vector<8x512xf32> to vector<8x8xf32>
    %26 = math.tanh %25 : vector<8x8xf32>
    %27 = vector.extract_strided_slice %12 {offsets = [0, 384], sizes = [8, 8], strides = [1, 1]} : vector<8x512xf32> to vector<8x8xf32>
    %28 = arith.negf %27 : vector<8x8xf32>
    %29 = math.exp %28 : vector<8x8xf32>
    %cst_16 = arith.constant 1.000000e+00 : f32
    %30 = vector.broadcast %cst_16 : f32 to vector<8x8xf32>
    %31 = arith.addf %30, %29 : vector<8x8xf32>
    %32 = arith.divf %30, %31 : vector<8x8xf32>
    %33 = arith.mulf %24, %8 : vector<8x8xf32>
    %34 = arith.mulf %18, %26 : vector<8x8xf32>
    %35 = arith.addf %33, %34 : vector<8x8xf32>
    %36 = math.tanh %35 : vector<8x8xf32>
    %37 = arith.mulf %32, %36 : vector<8x8xf32>
    %c8 = arith.constant 8 : index
    %c0_17 = arith.constant 0 : index
    %38 = vector.load %arg7[%c8, %c0_17] : memref<56x512xf32, #tpu.memory_space<vmem>>, vector<8x512xf32>
    %c0_18 = arith.constant 0 : index
    %c0_19 = arith.constant 0 : index
    %39 = vector.load %arg2[%c0_18, %c0_19] : memref<8x512xf32, #tpu.memory_space<vmem>>, vector<8x512xf32>
    %cst_20 = arith.constant dense<0.000000e+00> : vector<8x512xf32>
    %40 = tpu.matmul %37, %39, %cst_20 {dimension_numbers = #tpu.dot_dimension_numbers<[1], [0], [0], [1], [0, 0, 1, 1], [], []>} : vector<8x8xf32>, vector<8x512xf32>, vector<8x512xf32> -> vector<8x512xf32>
    %41 = arith.addf %38, %40 : vector<8x512xf32>
    %42 = vector.extract_strided_slice %41 {offsets = [0, 0], sizes = [8, 8], strides = [1, 1]} : vector<8x512xf32> to vector<8x8xf32>
    %43 = arith.negf %42 : vector<8x8xf32>
    %44 = math.exp %43 : vector<8x8xf32>
    %cst_21 = arith.constant 1.000000e+00 : f32
    %45 = vector.broadcast %cst_21 : f32 to vector<8x8xf32>
    %46 = arith.addf %45, %44 : vector<8x8xf32>
    %47 = arith.divf %45, %46 : vector<8x8xf32>
    %48 = vector.extract_strided_slice %41 {offsets = [0, 128], sizes = [8, 8], strides = [1, 1]} : vector<8x512xf32> to vector<8x8xf32>
    %49 = arith.negf %48 : vector<8x8xf32>
    %50 = math.exp %49 : vector<8x8xf32>
    %cst_22 = arith.constant 1.000000e+00 : f32
    %51 = vector.broadcast %cst_22 : f32 to vector<8x8xf32>
    %52 = arith.addf %51, %50 : vector<8x8xf32>
    %53 = arith.divf %51, %52 : vector<8x8xf32>
    %54 = vector.extract_strided_slice %41 {offsets = [0, 256], sizes = [8, 8], strides = [1, 1]} : vector<8x512xf32> to vector<8x8xf32>
    %55 = math.tanh %54 : vector<8x8xf32>
    %56 = vector.extract_strided_slice %41 {offsets = [0, 384], sizes = [8, 8], strides = [1, 1]} : vector<8x512xf32> to vector<8x8xf32>
    %57 = arith.negf %56 : vector<8x8xf32>
    %58 = math.exp %57 : vector<8x8xf32>
    %cst_23 = arith.constant 1.000000e+00 : f32
    %59 = vector.broadcast %cst_23 : f32 to vector<8x8xf32>
    %60 = arith.addf %59, %58 : vector<8x8xf32>
    %61 = arith.divf %59, %60 : vector<8x8xf32>
    %62 = arith.mulf %53, %35 : vector<8x8xf32>
    %63 = arith.mulf %47, %55 : vector<8x8xf32>
    %64 = arith.addf %62, %63 : vector<8x8xf32>
    %65 = math.tanh %64 : vector<8x8xf32>
    %66 = arith.mulf %61, %65 : vector<8x8xf32>
    %c16 = arith.constant 16 : index
    %c0_24 = arith.constant 0 : index
    %67 = vector.load %arg7[%c16, %c0_24] : memref<56x512xf32, #tpu.memory_space<vmem>>, vector<8x512xf32>
    %c0_25 = arith.constant 0 : index
    %c0_26 = arith.constant 0 : index
    %68 = vector.load %arg2[%c0_25, %c0_26] : memref<8x512xf32, #tpu.memory_space<vmem>>, vector<8x512xf32>
    %cst_27 = arith.constant dense<0.000000e+00> : vector<8x512xf32>
    %69 = tpu.matmul %66, %68, %cst_27 {dimension_numbers = #tpu.dot_dimension_numbers<[1], [0], [0], [1], [0, 0, 1, 1], [], []>} : vector<8x8xf32>, vector<8x512xf32>, vector<8x512xf32> -> vector<8x512xf32>
    %70 = arith.addf %67, %69 : vector<8x512xf32>
    %71 = vector.extract_strided_slice %70 {offsets = [0, 0], sizes = [8, 8], strides = [1, 1]} : vector<8x512xf32> to vector<8x8xf32>
    %72 = arith.negf %71 : vector<8x8xf32>
    %73 = math.exp %72 : vector<8x8xf32>
    %cst_28 = arith.constant 1.000000e+00 : f32
    %74 = vector.broadcast %cst_28 : f32 to vector<8x8xf32>
    %75 = arith.addf %74, %73 : vector<8x8xf32>
    %76 = arith.divf %74, %75 : vector<8x8xf32>
    %77 = vector.extract_strided_slice %70 {offsets = [0, 128], sizes = [8, 8], strides = [1, 1]} : vector<8x512xf32> to vector<8x8xf32>
    %78 = arith.negf %77 : vector<8x8xf32>
    %79 = math.exp %78 : vector<8x8xf32>
    %cst_29 = arith.constant 1.000000e+00 : f32
    %80 = vector.broadcast %cst_29 : f32 to vector<8x8xf32>
    %81 = arith.addf %80, %79 : vector<8x8xf32>
    %82 = arith.divf %80, %81 : vector<8x8xf32>
    %83 = vector.extract_strided_slice %70 {offsets = [0, 256], sizes = [8, 8], strides = [1, 1]} : vector<8x512xf32> to vector<8x8xf32>
    %84 = math.tanh %83 : vector<8x8xf32>
    %85 = vector.extract_strided_slice %70 {offsets = [0, 384], sizes = [8, 8], strides = [1, 1]} : vector<8x512xf32> to vector<8x8xf32>
    %86 = arith.negf %85 : vector<8x8xf32>
    %87 = math.exp %86 : vector<8x8xf32>
    %cst_30 = arith.constant 1.000000e+00 : f32
    %88 = vector.broadcast %cst_30 : f32 to vector<8x8xf32>
    %89 = arith.addf %88, %87 : vector<8x8xf32>
    %90 = arith.divf %88, %89 : vector<8x8xf32>
    %91 = arith.mulf %82, %64 : vector<8x8xf32>
    %92 = arith.mulf %76, %84 : vector<8x8xf32>
    %93 = arith.addf %91, %92 : vector<8x8xf32>
    %94 = math.tanh %93 : vector<8x8xf32>
    %95 = arith.mulf %90, %94 : vector<8x8xf32>
    %c24 = arith.constant 24 : index
    %c0_31 = arith.constant 0 : index
    %96 = vector.load %arg7[%c24, %c0_31] : memref<56x512xf32, #tpu.memory_space<vmem>>, vector<8x512xf32>
    %c0_32 = arith.constant 0 : index
    %c0_33 = arith.constant 0 : index
    %97 = vector.load %arg2[%c0_32, %c0_33] : memref<8x512xf32, #tpu.memory_space<vmem>>, vector<8x512xf32>
    %cst_34 = arith.constant dense<0.000000e+00> : vector<8x512xf32>
    %98 = tpu.matmul %95, %97, %cst_34 {dimension_numbers = #tpu.dot_dimension_numbers<[1], [0], [0], [1], [0, 0, 1, 1], [], []>} : vector<8x8xf32>, vector<8x512xf32>, vector<8x512xf32> -> vector<8x512xf32>
    %99 = arith.addf %96, %98 : vector<8x512xf32>
    %100 = vector.extract_strided_slice %99 {offsets = [0, 0], sizes = [8, 8], strides = [1, 1]} : vector<8x512xf32> to vector<8x8xf32>
    %101 = arith.negf %100 : vector<8x8xf32>
    %102 = math.exp %101 : vector<8x8xf32>
    %cst_35 = arith.constant 1.000000e+00 : f32
    %103 = vector.broadcast %cst_35 : f32 to vector<8x8xf32>
    %104 = arith.addf %103, %102 : vector<8x8xf32>
    %105 = arith.divf %103, %104 : vector<8x8xf32>
    %106 = vector.extract_strided_slice %99 {offsets = [0, 128], sizes = [8, 8], strides = [1, 1]} : vector<8x512xf32> to vector<8x8xf32>
    %107 = arith.negf %106 : vector<8x8xf32>
    %108 = math.exp %107 : vector<8x8xf32>
    %cst_36 = arith.constant 1.000000e+00 : f32
    %109 = vector.broadcast %cst_36 : f32 to vector<8x8xf32>
    %110 = arith.addf %109, %108 : vector<8x8xf32>
    %111 = arith.divf %109, %110 : vector<8x8xf32>
    %112 = vector.extract_strided_slice %99 {offsets = [0, 256], sizes = [8, 8], strides = [1, 1]} : vector<8x512xf32> to vector<8x8xf32>
    %113 = math.tanh %112 : vector<8x8xf32>
    %114 = vector.extract_strided_slice %99 {offsets = [0, 384], sizes = [8, 8], strides = [1, 1]} : vector<8x512xf32> to vector<8x8xf32>
    %115 = arith.negf %114 : vector<8x8xf32>
    %116 = math.exp %115 : vector<8x8xf32>
    %cst_37 = arith.constant 1.000000e+00 : f32
    %117 = vector.broadcast %cst_37 : f32 to vector<8x8xf32>
    %118 = arith.addf %117, %116 : vector<8x8xf32>
    %119 = arith.divf %117, %118 : vector<8x8xf32>
    %120 = arith.mulf %111, %93 : vector<8x8xf32>
    %121 = arith.mulf %105, %113 : vector<8x8xf32>
    %122 = arith.addf %120, %121 : vector<8x8xf32>
    %123 = math.tanh %122 : vector<8x8xf32>
    %124 = arith.mulf %119, %123 : vector<8x8xf32>
    %c32 = arith.constant 32 : index
    %c0_38 = arith.constant 0 : index
    %125 = vector.load %arg7[%c32, %c0_38] : memref<56x512xf32, #tpu.memory_space<vmem>>, vector<8x512xf32>
    %c0_39 = arith.constant 0 : index
    %c0_40 = arith.constant 0 : index
    %126 = vector.load %arg2[%c0_39, %c0_40] : memref<8x512xf32, #tpu.memory_space<vmem>>, vector<8x512xf32>
    %cst_41 = arith.constant dense<0.000000e+00> : vector<8x512xf32>
    %127 = tpu.matmul %124, %126, %cst_41 {dimension_numbers = #tpu.dot_dimension_numbers<[1], [0], [0], [1], [0, 0, 1, 1], [], []>} : vector<8x8xf32>, vector<8x512xf32>, vector<8x512xf32> -> vector<8x512xf32>
    %128 = arith.addf %125, %127 : vector<8x512xf32>
    %129 = vector.extract_strided_slice %128 {offsets = [0, 0], sizes = [8, 8], strides = [1, 1]} : vector<8x512xf32> to vector<8x8xf32>
    %130 = arith.negf %129 : vector<8x8xf32>
    %131 = math.exp %130 : vector<8x8xf32>
    %cst_42 = arith.constant 1.000000e+00 : f32
    %132 = vector.broadcast %cst_42 : f32 to vector<8x8xf32>
    %133 = arith.addf %132, %131 : vector<8x8xf32>
    %134 = arith.divf %132, %133 : vector<8x8xf32>
    %135 = vector.extract_strided_slice %128 {offsets = [0, 128], sizes = [8, 8], strides = [1, 1]} : vector<8x512xf32> to vector<8x8xf32>
    %136 = arith.negf %135 : vector<8x8xf32>
    %137 = math.exp %136 : vector<8x8xf32>
    %cst_43 = arith.constant 1.000000e+00 : f32
    %138 = vector.broadcast %cst_43 : f32 to vector<8x8xf32>
    %139 = arith.addf %138, %137 : vector<8x8xf32>
    %140 = arith.divf %138, %139 : vector<8x8xf32>
    %141 = vector.extract_strided_slice %128 {offsets = [0, 256], sizes = [8, 8], strides = [1, 1]} : vector<8x512xf32> to vector<8x8xf32>
    %142 = math.tanh %141 : vector<8x8xf32>
    %143 = vector.extract_strided_slice %128 {offsets = [0, 384], sizes = [8, 8], strides = [1, 1]} : vector<8x512xf32> to vector<8x8xf32>
    %144 = arith.negf %143 : vector<8x8xf32>
    %145 = math.exp %144 : vector<8x8xf32>
    %cst_44 = arith.constant 1.000000e+00 : f32
    %146 = vector.broadcast %cst_44 : f32 to vector<8x8xf32>
    %147 = arith.addf %146, %145 : vector<8x8xf32>
    %148 = arith.divf %146, %147 : vector<8x8xf32>
    %149 = arith.mulf %140, %122 : vector<8x8xf32>
    %150 = arith.mulf %134, %142 : vector<8x8xf32>
    %151 = arith.addf %149, %150 : vector<8x8xf32>
    %152 = math.tanh %151 : vector<8x8xf32>
    %153 = arith.mulf %148, %152 : vector<8x8xf32>
    %c40 = arith.constant 40 : index
    %c0_45 = arith.constant 0 : index
    %154 = vector.load %arg7[%c40, %c0_45] : memref<56x512xf32, #tpu.memory_space<vmem>>, vector<8x512xf32>
    %c0_46 = arith.constant 0 : index
    %c0_47 = arith.constant 0 : index
    %155 = vector.load %arg2[%c0_46, %c0_47] : memref<8x512xf32, #tpu.memory_space<vmem>>, vector<8x512xf32>
    %cst_48 = arith.constant dense<0.000000e+00> : vector<8x512xf32>
    %156 = tpu.matmul %153, %155, %cst_48 {dimension_numbers = #tpu.dot_dimension_numbers<[1], [0], [0], [1], [0, 0, 1, 1], [], []>} : vector<8x8xf32>, vector<8x512xf32>, vector<8x512xf32> -> vector<8x512xf32>
    %157 = arith.addf %154, %156 : vector<8x512xf32>
    %158 = vector.extract_strided_slice %157 {offsets = [0, 0], sizes = [8, 8], strides = [1, 1]} : vector<8x512xf32> to vector<8x8xf32>
    %159 = arith.negf %158 : vector<8x8xf32>
    %160 = math.exp %159 : vector<8x8xf32>
    %cst_49 = arith.constant 1.000000e+00 : f32
    %161 = vector.broadcast %cst_49 : f32 to vector<8x8xf32>
    %162 = arith.addf %161, %160 : vector<8x8xf32>
    %163 = arith.divf %161, %162 : vector<8x8xf32>
    %164 = vector.extract_strided_slice %157 {offsets = [0, 128], sizes = [8, 8], strides = [1, 1]} : vector<8x512xf32> to vector<8x8xf32>
    %165 = arith.negf %164 : vector<8x8xf32>
    %166 = math.exp %165 : vector<8x8xf32>
    %cst_50 = arith.constant 1.000000e+00 : f32
    %167 = vector.broadcast %cst_50 : f32 to vector<8x8xf32>
    %168 = arith.addf %167, %166 : vector<8x8xf32>
    %169 = arith.divf %167, %168 : vector<8x8xf32>
    %170 = vector.extract_strided_slice %157 {offsets = [0, 256], sizes = [8, 8], strides = [1, 1]} : vector<8x512xf32> to vector<8x8xf32>
    %171 = math.tanh %170 : vector<8x8xf32>
    %172 = vector.extract_strided_slice %157 {offsets = [0, 384], sizes = [8, 8], strides = [1, 1]} : vector<8x512xf32> to vector<8x8xf32>
    %173 = arith.negf %172 : vector<8x8xf32>
    %174 = math.exp %173 : vector<8x8xf32>
    %cst_51 = arith.constant 1.000000e+00 : f32
    %175 = vector.broadcast %cst_51 : f32 to vector<8x8xf32>
    %176 = arith.addf %175, %174 : vector<8x8xf32>
    %177 = arith.divf %175, %176 : vector<8x8xf32>
    %178 = arith.mulf %169, %151 : vector<8x8xf32>
    %179 = arith.mulf %163, %171 : vector<8x8xf32>
    %180 = arith.addf %178, %179 : vector<8x8xf32>
    %181 = math.tanh %180 : vector<8x8xf32>
    %182 = arith.mulf %177, %181 : vector<8x8xf32>
    %c48 = arith.constant 48 : index
    %c0_52 = arith.constant 0 : index
    %183 = vector.load %arg7[%c48, %c0_52] : memref<56x512xf32, #tpu.memory_space<vmem>>, vector<8x512xf32>
    %c0_53 = arith.constant 0 : index
    %c0_54 = arith.constant 0 : index
    %184 = vector.load %arg2[%c0_53, %c0_54] : memref<8x512xf32, #tpu.memory_space<vmem>>, vector<8x512xf32>
    %cst_55 = arith.constant dense<0.000000e+00> : vector<8x512xf32>
    %185 = tpu.matmul %182, %184, %cst_55 {dimension_numbers = #tpu.dot_dimension_numbers<[1], [0], [0], [1], [0, 0, 1, 1], [], []>} : vector<8x8xf32>, vector<8x512xf32>, vector<8x512xf32> -> vector<8x512xf32>
    %186 = arith.addf %183, %185 : vector<8x512xf32>
    %187 = vector.extract_strided_slice %186 {offsets = [0, 0], sizes = [8, 8], strides = [1, 1]} : vector<8x512xf32> to vector<8x8xf32>
    %188 = arith.negf %187 : vector<8x8xf32>
    %189 = math.exp %188 : vector<8x8xf32>
    %cst_56 = arith.constant 1.000000e+00 : f32
    %190 = vector.broadcast %cst_56 : f32 to vector<8x8xf32>
    %191 = arith.addf %190, %189 : vector<8x8xf32>
    %192 = arith.divf %190, %191 : vector<8x8xf32>
    %193 = vector.extract_strided_slice %186 {offsets = [0, 128], sizes = [8, 8], strides = [1, 1]} : vector<8x512xf32> to vector<8x8xf32>
    %194 = arith.negf %193 : vector<8x8xf32>
    %195 = math.exp %194 : vector<8x8xf32>
    %cst_57 = arith.constant 1.000000e+00 : f32
    %196 = vector.broadcast %cst_57 : f32 to vector<8x8xf32>
    %197 = arith.addf %196, %195 : vector<8x8xf32>
    %198 = arith.divf %196, %197 : vector<8x8xf32>
    %199 = vector.extract_strided_slice %186 {offsets = [0, 256], sizes = [8, 8], strides = [1, 1]} : vector<8x512xf32> to vector<8x8xf32>
    %200 = math.tanh %199 : vector<8x8xf32>
    %201 = vector.extract_strided_slice %186 {offsets = [0, 384], sizes = [8, 8], strides = [1, 1]} : vector<8x512xf32> to vector<8x8xf32>
    %202 = arith.negf %201 : vector<8x8xf32>
    %203 = math.exp %202 : vector<8x8xf32>
    %cst_58 = arith.constant 1.000000e+00 : f32
    %204 = vector.broadcast %cst_58 : f32 to vector<8x8xf32>
    %205 = arith.addf %204, %203 : vector<8x8xf32>
    %206 = arith.divf %204, %205 : vector<8x8xf32>
    %207 = arith.mulf %198, %180 : vector<8x8xf32>
    %208 = arith.mulf %192, %200 : vector<8x8xf32>
    %209 = arith.addf %207, %208 : vector<8x8xf32>
    %210 = math.tanh %209 : vector<8x8xf32>
    %211 = arith.mulf %206, %210 : vector<8x8xf32>
    %c0_59 = arith.constant 0 : index
    %c0_60 = arith.constant 0 : index
    %212 = vector.load %arg4[%c0_59, %c0_60] : memref<8x128xf32, #tpu.memory_space<vmem>>, vector<8x128xf32>
    %cst_61 = arith.constant dense<0.000000e+00> : vector<8x128xf32>
    %213 = tpu.matmul %211, %212, %cst_61 {dimension_numbers = #tpu.dot_dimension_numbers<[1], [0], [0], [1], [0, 0, 1, 1], [], []>} : vector<8x8xf32>, vector<8x128xf32>, vector<8x128xf32> -> vector<8x128xf32>
    %c0_62 = arith.constant 0 : index
    %c0_63 = arith.constant 0 : index
    %214 = vector.load %arg5[%c0_62, %c0_63] : memref<1x128xf32, #tpu.memory_space<vmem>>, vector<1x128xf32>
    %215 = vector.broadcast %214 : vector<1x128xf32> to vector<8x128xf32>
    %216 = arith.addf %213, %215 : vector<8x128xf32>
    %c0_64 = arith.constant 0 : index
    %c0_65 = arith.constant 0 : index
    %217 = vector.load %arg6[%c0_64, %c0_65] : memref<8x128xf32, #tpu.memory_space<vmem>>, vector<8x128xf32>
    tpu.vector_store %arg6[%c0_64, %c0_65], %216 {strides = array<i32>} : memref<8x128xf32, #tpu.memory_space<vmem>>, vector<8x128xf32>,
    return
  }
}

</mosaic_0001>

<llo_original>
// kernel: _forward.1
$region0: #{_forward.1}
  #allocation0 [shape = 'u32[]', space=smem, size = 0x4, offset = 0x4, fixed_abs, tag = 'smem constant byte address 0x4 - core index']
  #allocation1 [shape = 'u32[144,128]{1,0:T(1,128)}', space=vmem, size = 0x12000, scoped, tag = 'internal scratch']
  #allocation2 [shape = 'f32[56,512]{1,0:T(8,128)}', space=vmem, size = 0x1c000, scoped, tag = 'scratch operand']
  %s0 = inlined_call_operand.vmem [shape: f32[56,8], index: 0, kind: input, shape index: {}]
  %s1 = inlined_call_operand.vmem [shape: f32[8,512], index: 1, kind: input, shape index: {}]
  %s2 = inlined_call_operand.vmem [shape: f32[8,512], index: 2, kind: input, shape index: {}]
  %s3 = inlined_call_operand.vmem [shape: f32[1,512], index: 3, kind: input, shape index: {}]
  %s4 = inlined_call_operand.vmem [shape: f32[8,128], index: 4, kind: input, shape index: {}]
  %s5 = inlined_call_operand.vmem [shape: f32[1,128], index: 5, kind: input, shape index: {}]
  %s6 = inlined_call_operand.vmem [shape: f32[8,128], index: 6, kind: output, shape index: {}]
  %s7 = sld [smem:[#allocation0]]
  $region34: #{_forward.1} parent=0
    _
  %s9 = ssub.s32 1, %s7
  %s10 = scalar_select 0, %s9, %s7
  // Predicated region
  $region2: #{_forward.1} parent=0 // pred_check
    _
  $region3: #{_forward.1} parent=0 // pred_check_branch
    %12 = sbr.rel (0) target = $region5
  $region4: #{_forward.1} parent=0 // pred_region
    _
  $region5: #{_forward.1} parent=0 // pred_fallthru
    _
  // Predicated region
  $region6: #{_forward.1} parent=0 // pred_check
    _
  $region7: #{_forward.1} parent=0 // pred_check_branch
    %14 = sbr.rel (0) target = $region9
  $region8: #{_forward.1} parent=0 // pred_region
    _
  $region9: #{_forward.1} parent=0 // pred_fallthru
    _
  // Predicated region
  $region10: #{_forward.1} parent=0 // pred_check
    _
  $region11: #{_forward.1} parent=0 // pred_check_branch
    %16 = sbr.rel (0) target = $region13
  $region12: #{_forward.1} parent=0 // pred_region
    _
  $region13: #{_forward.1} parent=0 // pred_fallthru
    _
  // Predicated region
  $region14: #{_forward.1} parent=0 // pred_check
    _
  $region15: #{_forward.1} parent=0 // pred_check_branch
    %18 = sbr.rel (0) target = $region17
  $region16: #{_forward.1} parent=0 // pred_region
    _
  $region17: #{_forward.1} parent=0 // pred_fallthru
    _
  // Predicated region
  $region18: #{_forward.1} parent=0 // pred_check
    _
  $region19: #{_forward.1} parent=0 // pred_check_branch
    %20 = sbr.rel (0) target = $region21
  $region20: #{_forward.1} parent=0 // pred_region
    _
  $region21: #{_forward.1} parent=0 // pred_fallthru
    _
  // Predicated region
  $region22: #{_forward.1} parent=0 // pred_check
    _
  $region23: #{_forward.1} parent=0 // pred_check_branch
    %22 = sbr.rel (0) target = $region25
  $region24: #{_forward.1} parent=0 // pred_region
    _
  $region25: #{_forward.1} parent=0 // pred_fallthru
    _
  %v23 = vld [vmem:[%s0] sm:$0xff]
  %v24 = vld [vmem:[%s0 + $0x8] sm:$0xff]
  %v25 = vld [vmem:[%s0 + $0x10] sm:$0xff]
  %v26 = vld [vmem:[%s0 + $0x18] sm:$0xff]
  %v27 = vld [vmem:[%s0 + $0x20] sm:$0xff]
  %v28 = vld [vmem:[%s0 + $0x28] sm:$0xff]
  %v29 = vld [vmem:[%s0 + $0x30] sm:$0xff]
  %v30 = vld [vmem:[%s1] sm:$0xff]
  %v31 = vld [vmem:[%s1 + $0x8] sm:$0xff]
  %v32 = vld [vmem:[%s1 + $0x10] sm:$0xff]
  %v33 = vld [vmem:[%s1 + $0x18] sm:$0xff]
  %v34 = vld [vmem:[%s3] sm:$0xf]
  %v36 = vlaneseq
  %v37 = vshrl.u32 %v36, 7
  %v38 = vsub.s32 0, %v37
  %v39 = vrot.slane %v34, %v38
  %v40 = vlaneseq
  %v41 = vshrl.u32 %v40, 7
  %v42 = vsub.s32 1, %v41
  %v43 = vrot.slane %v34, %v42
  %v44 = vlaneseq
  %v45 = vshrl.u32 %v44, 7
  %v46 = vsub.s32 2, %v45
  %v47 = vrot.slane %v34, %v46
  %v48 = vlaneseq
  %v49 = vshrl.u32 %v48, 7
  %v50 = vsub.s32 3, %v49
  %v51 = vrot.slane %v34, %v50
  %vm56 = vcmask 64512
  %v58 = vsel %vm56, %v23, 0
  %v61 = vsel %vm56, %v24, 0
  %v64 = vsel %vm56, %v25, 0
  %v67 = vsel %vm56, %v26, 0
  %v70 = vsel %vm56, %v27, 0
  %v73 = vsel %vm56, %v28, 0
  %v76 = vsel %vm56, %v29, 0
  %78 = vmatprep.subr.mxu0 %v31
  %79 = vmatpush1.msra.mxu0 %v30
  %80 = vmatprep.subr.mxu0 0.0
  %81 = vmatpush1.msra.mxu0 0.0
  %82 = vmatprep.subr.mxu0 0.0
  %83 = vmatpush1.msra.mxu0 0.0
  %84 = vmatprep.subr.mxu0 0.0
  %85 = vmatpush1.msra.mxu0 0.0
  %86 = vmatprep.subr.mxu0 0.0
  %87 = vmatpush1.msra.mxu0 0.0
  %88 = vmatprep.subr.mxu0 0.0
  %89 = vmatpush1.msra.mxu0 0.0
  %90 = vmatprep.subr.mxu0 0.0
  %91 = vmatpush1.msra.mxu0 0.0
  %92 = vmatprep.subr.mxu0 0.0
  %93 = vmatpush1.msra.mxu0 0.0
  %94 = vmatprep.subr.mxu0 0.0
  %95 = vmatpush1.msra.mxu0 0.0
  %96 = vmatprep.subr.mxu0 0.0
  %97 = vmatpush1.msra.mxu0 0.0
  %98 = vmatprep.subr.mxu0 0.0
  %99 = vmatpush1.msra.mxu0 0.0
  %100 = vmatprep.subr.mxu0 0.0
  %101 = vmatpush1.msra.mxu0 0.0
  %102 = vmatprep.subr.mxu0 0.0
  %103 = vmatpush1.msra.mxu0 0.0
  %104 = vmatprep.subr.mxu0 0.0
  %105 = vmatpush1.msra.mxu0 0.0
  %106 = vmatprep.subr.mxu0 0.0
  %107 = vmatpush1.msra.mxu0 0.0
  %108 = vmatprep.subr.mxu0 0.0
  %109 = vmatpush1.msra.mxu0 0.0
  %110 = vmatprep.subr.mxu0 0.0
  %111 = vmatpush1.msra.mxu0 0.0
  %112 = vmatprep.subr.mxu0 0.0
  %113 = vmatpush1.msra.mxu0 0.0
  %114 = vmatprep.subr.mxu0 0.0
  %115 = vmatpush1.msra.mxu0 0.0
  %116 = vmatprep.subr.mxu0 0.0
  %117 = vmatpush1.msra.mxu0 0.0
  %118 = vmatprep.subr.mxu0 0.0
  %119 = vmatpush1.msra.mxu0 0.0
  %120 = vmatprep.subr.mxu0 0.0
  %121 = vmatpush1.msra.mxu0 0.0
  %122 = vmatprep.subr.mxu0 0.0
  %123 = vmatpush1.msra.mxu0 0.0
  %124 = vmatprep.subr.mxu0 0.0
  %125 = vmatpush1.msra.mxu0 0.0
  %126 = vmatprep.subr.mxu0 0.0
  %127 = vmatpush1.msra.mxu0 0.0
  %128 = vmatprep.subr.mxu0 0.0
  %129 = vmatpush1.msra.mxu0 0.0
  %130 = vmatprep.subr.mxu0 0.0
  %131 = vmatpush1.msra.mxu0 0.0
  %132 = vmatprep.subr.mxu0 0.0
  %133 = vmatpush1.msra.mxu0 0.0
  %134 = vmatprep.subr.mxu0 0.0
  %135 = vmatpush1.msra.mxu0 0.0
  %136 = vmatprep.subr.mxu0 0.0
  %137 = vmatpush1.msra.mxu0 0.0
  %138 = vmatprep.subr.mxu0 0.0
  %139 = vmatpush1.msra.mxu0 0.0
  %140 = vmatprep.subr.mxu0 0.0
  %141 = vmatpush1.msra.mxu0 0.0
  %142 = vmatprep.mubr.f32.mxu0 0.0
  %143 = vmatmul.mubr.f32.gmra.mrb[0].mxu0 %v58
  %v144 = vpop.f32.mrb[0].mxu0
  %v145 = vadd.f32 %v39, %v144
  %v146 = vpop.f32.mrb[0].mxu0
  %v147 = vadd.f32 %v43, %v146
  %148 = vmatprep.mubr.f32.mxu0 0.0
  %149 = vmatmul.mubr.f32.gmra.mrb[0].mxu0 %v61
  %v150 = vpop.f32.mrb[0].mxu0
  %v151 = vadd.f32 %v39, %v150
  %v152 = vpop.f32.mrb[0].mxu0
  %v153 = vadd.f32 %v43, %v152
  %154 = vmatprep.mubr.f32.mxu0 0.0
  %155 = vmatmul.mubr.f32.gmra.mrb[0].mxu0 %v64
  %v156 = vpop.f32.mrb[0].mxu0
  %v157 = vadd.f32 %v39, %v156
  %v158 = vpop.f32.mrb[0].mxu0
  %v159 = vadd.f32 %v43, %v158
  %160 = vmatprep.mubr.f32.mxu0 0.0
  %161 = vmatmul.mubr.f32.gmra.mrb[0].mxu0 %v67
  %v162 = vpop.f32.mrb[0].mxu0
  %v163 = vadd.f32 %v39, %v162
  %v164 = vpop.f32.mrb[0].mxu0
  %v165 = vadd.f32 %v43, %v164
  %166 = vmatprep.mubr.f32.mxu0 0.0
  %167 = vmatmul.mubr.f32.gmra.mrb[0].mxu0 %v70
  %v168 = vpop.f32.mrb[0].mxu0
  %v169 = vadd.f32 %v39, %v168
  %v170 = vpop.f32.mrb[0].mxu0
  %v171 = vadd.f32 %v43, %v170
  %172 = vmatprep.mubr.f32.mxu0 0.0
  %173 = vmatmul.mubr.f32.gmra.mrb[0].mxu0 %v73
  %v174 = vpop.f32.mrb[0].mxu0
  %v175 = vadd.f32 %v39, %v174
  %v176 = vpop.f32.mrb[0].mxu0
  %v177 = vadd.f32 %v43, %v176
  %178 = vmatprep.mubr.f32.mxu0 0.0
  %179 = vmatmul.mubr.f32.gmra.mrb[0].mxu0 %v76
  %v180 = vpop.f32.mrb[0].mxu0
  %v181 = vadd.f32 %v39, %v180
  %v182 = vpop.f32.mrb[0].mxu0
  %v183 = vadd.f32 %v43, %v182
  %184 = vdwg.mxu0
  %185 = vmatprep.subr.mxu0 %v33
  %186 = vmatpush1.msra.mxu0 %v32
  %187 = vmatprep.subr.mxu0 0.0
  %188 = vmatpush1.msra.mxu0 0.0
  %189 = vmatprep.subr.mxu0 0.0
  %190 = vmatpush1.msra.mxu0 0.0
  %191 = vmatprep.subr.mxu0 0.0
  %192 = vmatpush1.msra.mxu0 0.0
  %193 = vmatprep.subr.mxu0 0.0
  %194 = vmatpush1.msra.mxu0 0.0
  %195 = vmatprep.subr.mxu0 0.0
  %196 = vmatpush1.msra.mxu0 0.0
  %197 = vmatprep.subr.mxu0 0.0
  %198 = vmatpush1.msra.mxu0 0.0
  %199 = vmatprep.subr.mxu0 0.0
  %200 = vmatpush1.msra.mxu0 0.0
  %201 = vmatprep.subr.mxu0 0.0
  %202 = vmatpush1.msra.mxu0 0.0
  %203 = vmatprep.subr.mxu0 0.0
  %204 = vmatpush1.msra.mxu0 0.0
  %205 = vmatprep.subr.mxu0 0.0
  %206 = vmatpush1.msra.mxu0 0.0
  %207 = vmatprep.subr.mxu0 0.0
  %208 = vmatpush1.msra.mxu0 0.0
  %209 = vmatprep.subr.mxu0 0.0
  %210 = vmatpush1.msra.mxu0 0.0
  %211 = vmatprep.subr.mxu0 0.0
  %212 = vmatpush1.msra.mxu0 0.0
  %213 = vmatprep.subr.mxu0 0.0
  %214 = vmatpush1.msra.mxu0 0.0
  %215 = vmatprep.subr.mxu0 0.0
  %216 = vmatpush1.msra.mxu0 0.0
  %217 = vmatprep.subr.mxu0 0.0
  %218 = vmatpush1.msra.mxu0 0.0
  %219 = vmatprep.subr.mxu0 0.0
  %220 = vmatpush1.msra.mxu0 0.0
  %221 = vmatprep.subr.mxu0 0.0
  %222 = vmatpush1.msra.mxu0 0.0
  %223 = vmatprep.subr.mxu0 0.0
  %224 = vmatpush1.msra.mxu0 0.0
  %225 = vmatprep.subr.mxu0 0.0
  %226 = vmatpush1.msra.mxu0 0.0
  %227 = vmatprep.subr.mxu0 0.0
  %228 = vmatpush1.msra.mxu0 0.0
  %229 = vmatprep.subr.mxu0 0.0
  %230 = vmatpush1.msra.mxu0 0.0
  %231 = vmatprep.subr.mxu0 0.0
  %232 = vmatpush1.msra.mxu0 0.0
  %233 = vmatprep.subr.mxu0 0.0
  %234 = vmatpush1.msra.mxu0 0.0
  %235 = vmatprep.subr.mxu0 0.0
  %236 = vmatpush1.msra.mxu0 0.0
  %237 = vmatprep.subr.mxu0 0.0
  %238 = vmatpush1.msra.mxu0 0.0
  %239 = vmatprep.subr.mxu0 0.0
  %240 = vmatpush1.msra.mxu0 0.0
  %241 = vmatprep.subr.mxu0 0.0
  %242 = vmatpush1.msra.mxu0 0.0
  %243 = vmatprep.subr.mxu0 0.0
  %244 = vmatpush1.msra.mxu0 0.0
  %245 = vmatprep.subr.mxu0 0.0
  %246 = vmatpush1.msra.mxu0 0.0
  %247 = vmatprep.subr.mxu0 0.0
  %248 = vmatpush1.msra.mxu0 0.0
  %249 = vmatprep.mubr.f32.mxu0 0.0
  %250 = vmatmul.mubr.f32.gmra.mrb[0].mxu0 %v58
  %v251 = vpop.f32.mrb[0].mxu0
  %v252 = vadd.f32 %v47, %v251
  %v253 = vpop.f32.mrb[0].mxu0
  %v254 = vadd.f32 %v51, %v253
  %255 = vmatprep.mubr.f32.mxu0 0.0
  %256 = vmatmul.mubr.f32.gmra.mrb[0].mxu0 %v61
  %v257 = vpop.f32.mrb[0].mxu0
  %v258 = vadd.f32 %v47, %v257
  %v259 = vpop.f32.mrb[0].mxu0
  %v260 = vadd.f32 %v51, %v259
  %261 = vmatprep.mubr.f32.mxu0 0.0
  %262 = vmatmul.mubr.f32.gmra.mrb[0].mxu0 %v64
  %v263 = vpop.f32.mrb[0].mxu0
  %v264 = vadd.f32 %v47, %v263
  %v265 = vpop.f32.mrb[0].mxu0
  %v266 = vadd.f32 %v51, %v265
  %267 = vmatprep.mubr.f32.mxu0 0.0
  %268 = vmatmul.mubr.f32.gmra.mrb[0].mxu0 %v67
  %v269 = vpop.f32.mrb[0].mxu0
  %v270 = vadd.f32 %v47, %v269
  %v271 = vpop.f32.mrb[0].mxu0
  %v272 = vadd.f32 %v51, %v271
  %273 = vmatprep.mubr.f32.mxu0 0.0
  %274 = vmatmul.mubr.f32.gmra.mrb[0].mxu0 %v70
  %v275 = vpop.f32.mrb[0].mxu0
  %v276 = vadd.f32 %v47, %v275
  %v277 = vpop.f32.mrb[0].mxu0
  %v278 = vadd.f32 %v51, %v277
  %279 = vmatprep.mubr.f32.mxu0 0.0
  %280 = vmatmul.mubr.f32.gmra.mrb[0].mxu0 %v73
  %v281 = vpop.f32.mrb[0].mxu0
  %v282 = vadd.f32 %v47, %v281
  %v283 = vpop.f32.mrb[0].mxu0
  %v284 = vadd.f32 %v51, %v283
  %285 = vmatprep.mubr.f32.mxu0 0.0
  %286 = vmatmul.mubr.f32.gmra.mrb[0].mxu0 %v76
  %v287 = vpop.f32.mrb[0].mxu0
  %v288 = vadd.f32 %v47, %v287
  %v289 = vpop.f32.mrb[0].mxu0
  %v290 = vadd.f32 %v51, %v289
  %291 = vdwg.mxu0
  %292 = vst [vmem:[#allocation2] sm:$0xff] %v145
  %293 = vst [vmem:[#allocation2 + $0x8] sm:$0xff] %v147
  %294 = vst [vmem:[#allocation2 + $0x10] sm:$0xff] %v252
  %295 = vst [vmem:[#allocation2 + $0x18] sm:$0xff] %v254
  %296 = vst [vmem:[#allocation2 + $0x20] sm:$0xff] %v151
  %297 = vst [vmem:[#allocation2 + $0x28] sm:$0xff] %v153
  %298 = vst [vmem:[#allocation2 + $0x30] sm:$0xff] %v258
  %299 = vst [vmem:[#allocation2 + $0x38] sm:$0xff] %v260
  %300 = vst [vmem:[#allocation2 + $0x40] sm:$0xff] %v157
  %301 = vst [vmem:[#allocation2 + $0x48] sm:$0xff] %v159
  %302 = vst [vmem:[#allocation2 + $0x50] sm:$0xff] %v264
  %303 = vst [vmem:[#allocation2 + $0x58] sm:$0xff] %v266
  %304 = vst [vmem:[#allocation2 + $0x60] sm:$0xff] %v163
  %305 = vst [vmem:[#allocation2 + $0x68] sm:$0xff] %v165
  %306 = vst [vmem:[#allocation2 + $0x70] sm:$0xff] %v270
  %307 = vst [vmem:[#allocation2 + $0x78] sm:$0xff] %v272
  %308 = vst [vmem:[#allocation2 + $0x80] sm:$0xff] %v169
  %309 = vst [vmem:[#allocation2 + $0x88] sm:$0xff] %v171
  %310 = vst [vmem:[#allocation2 + $0x90] sm:$0xff] %v276
  %311 = vst [vmem:[#allocation2 + $0x98] sm:$0xff] %v278
  %312 = vst [vmem:[#allocation2 + $0xa0] sm:$0xff] %v175
  %313 = vst [vmem:[#allocation2 + $0xa8] sm:$0xff] %v177
  %314 = vst [vmem:[#allocation2 + $0xb0] sm:$0xff] %v282
  %315 = vst [vmem:[#allocation2 + $0xb8] sm:$0xff] %v284
  %316 = vst [vmem:[#allocation2 + $0xc0] sm:$0xff] %v181
  %317 = vst [vmem:[#allocation2 + $0xc8] sm:$0xff] %v183
  %318 = vst [vmem:[#allocation2 + $0xd0] sm:$0xff] %v288
  %319 = vst [vmem:[#allocation2 + $0xd8] sm:$0xff] %v290
  %v320 = vld [vmem:[#allocation2] sm:$0xff]
  %v321 = vld [vmem:[#allocation2 + $0x8] sm:$0xff]
  %v322 = vld [vmem:[#allocation2 + $0x10] sm:$0xff]
  %v323 = vld [vmem:[#allocation2 + $0x18] sm:$0xff]
  %v324 = vld [vmem:[%s2] sm:$0xff]
  %v325 = vld [vmem:[%s2 + $0x8] sm:$0xff]
  %v326 = vld [vmem:[%s2 + $0x10] sm:$0xff]
  %v327 = vld [vmem:[%s2 + $0x18] sm:$0xff]
  %v329 = vsel %vm56, 0.0, 0
  %331 = vmatprep.subr.mxu0 %v325
  %332 = vmatpush1.msra.mxu0 %v324
  %333 = vmatprep.subr.mxu0 0.0
  %334 = vmatpush1.msra.mxu0 0.0
  %335 = vmatprep.subr.mxu0 0.0
  %336 = vmatpush1.msra.mxu0 0.0
  %337 = vmatprep.subr.mxu0 0.0
  %338 = vmatpush1.msra.mxu0 0.0
  %339 = vmatprep.subr.mxu0 0.0
  %340 = vmatpush1.msra.mxu0 0.0
  %341 = vmatprep.subr.mxu0 0.0
  %342 = vmatpush1.msra.mxu0 0.0
  %343 = vmatprep.subr.mxu0 0.0
  %344 = vmatpush1.msra.mxu0 0.0
  %345 = vmatprep.subr.mxu0 0.0
  %346 = vmatpush1.msra.mxu0 0.0
  %347 = vmatprep.subr.mxu0 0.0
  %348 = vmatpush1.msra.mxu0 0.0
  %349 = vmatprep.subr.mxu0 0.0
  %350 = vmatpush1.msra.mxu0 0.0
  %351 = vmatprep.subr.mxu0 0.0
  %352 = vmatpush1.msra.mxu0 0.0
  %353 = vmatprep.subr.mxu0 0.0
  %354 = vmatpush1.msra.mxu0 0.0
  %355 = vmatprep.subr.mxu0 0.0
  %356 = vmatpush1.msra.mxu0 0.0
  %357 = vmatprep.subr.mxu0 0.0
  %358 = vmatpush1.msra.mxu0 0.0
  %359 = vmatprep.subr.mxu0 0.0
  %360 = vmatpush1.msra.mxu0 0.0
  %361 = vmatprep.subr.mxu0 0.0
  %362 = vmatpush1.msra.mxu0 0.0
  %363 = vmatprep.subr.mxu0 0.0
  %364 = vmatpush1.msra.mxu0 0.0
  %365 = vmatprep.subr.mxu0 0.0
  %366 = vmatpush1.msra.mxu0 0.0
  %367 = vmatprep.subr.mxu0 0.0
  %368 = vmatpush1.msra.mxu0 0.0
  %369 = vmatprep.subr.mxu0 0.0
  %370 = vmatpush1.msra.mxu0 0.0
  %371 = vmatprep.subr.mxu0 0.0
  %372 = vmatpush1.msra.mxu0 0.0
  %373 = vmatprep.subr.mxu0 0.0
  %374 = vmatpush1.msra.mxu0 0.0
  %375 = vmatprep.subr.mxu0 0.0
  %376 = vmatpush1.msra.mxu0 0.0
  %377 = vmatprep.subr.mxu0 0.0
  %378 = vmatpush1.msra.mxu0 0.0
  %379 = vmatprep.subr.mxu0 0.0
  %380 = vmatpush1.msra.mxu0 0.0
  %381 = vmatprep.subr.mxu0 0.0
  %382 = vmatpush1.msra.mxu0 0.0
  %383 = vmatprep.subr.mxu0 0.0
  %384 = vmatpush1.msra.mxu0 0.0
  %385 = vmatprep.subr.mxu0 0.0
  %386 = vmatpush1.msra.mxu0 0.0
  %387 = vmatprep.subr.mxu0 0.0
  %388 = vmatpush1.msra.mxu0 0.0
  %389 = vmatprep.subr.mxu0 0.0
  %390 = vmatpush1.msra.mxu0 0.0
  %391 = vmatprep.subr.mxu0 0.0
  %392 = vmatpush1.msra.mxu0 0.0
  %393 = vmatprep.subr.mxu0 0.0
  %394 = vmatpush1.msra.mxu0 0.0
  %395 = vmatprep.mubr.f32.mxu0 0.0
  %396 = vmatmul.mubr.f32.gmra.mrb[0].mxu0 %v329
  %v397 = vpop.f32.mrb[0].mxu0
  %v398 = vadd.f32 0.0, %v397
  %v399 = vpop.f32.mrb[0].mxu0
  %v400 = vadd.f32 0.0, %v399
  %401 = vdwg.mxu0
  %402 = vmatprep.subr.mxu0 %v327
  %403 = vmatpush1.msra.mxu0 %v326
  %404 = vmatprep.subr.mxu0 0.0
  %405 = vmatpush1.msra.mxu0 0.0
  %406 = vmatprep.subr.mxu0 0.0
  %407 = vmatpush1.msra.mxu0 0.0
  %408 = vmatprep.subr.mxu0 0.0
  %409 = vmatpush1.msra.mxu0 0.0
  %410 = vmatprep.subr.mxu0 0.0
  %411 = vmatpush1.msra.mxu0 0.0
  %412 = vmatprep.subr.mxu0 0.0
  %413 = vmatpush1.msra.mxu0 0.0
  %414 = vmatprep.subr.mxu0 0.0
  %415 = vmatpush1.msra.mxu0 0.0
  %416 = vmatprep.subr.mxu0 0.0
  %417 = vmatpush1.msra.mxu0 0.0
  %418 = vmatprep.subr.mxu0 0.0
  %419 = vmatpush1.msra.mxu0 0.0
  %420 = vmatprep.subr.mxu0 0.0
  %421 = vmatpush1.msra.mxu0 0.0
  %422 = vmatprep.subr.mxu0 0.0
  %423 = vmatpush1.msra.mxu0 0.0
  %424 = vmatprep.subr.mxu0 0.0
  %425 = vmatpush1.msra.mxu0 0.0
  %426 = vmatprep.subr.mxu0 0.0
  %427 = vmatpush1.msra.mxu0 0.0
  %428 = vmatprep.subr.mxu0 0.0
  %429 = vmatpush1.msra.mxu0 0.0
  %430 = vmatprep.subr.mxu0 0.0
  %431 = vmatpush1.msra.mxu0 0.0
  %432 = vmatprep.subr.mxu0 0.0
  %433 = vmatpush1.msra.mxu0 0.0
  %434 = vmatprep.subr.mxu0 0.0
  %435 = vmatpush1.msra.mxu0 0.0
  %436 = vmatprep.subr.mxu0 0.0
  %437 = vmatpush1.msra.mxu0 0.0
  %438 = vmatprep.subr.mxu0 0.0
  %439 = vmatpush1.msra.mxu0 0.0
  %440 = vmatprep.subr.mxu0 0.0
  %441 = vmatpush1.msra.mxu0 0.0
  %442 = vmatprep.subr.mxu0 0.0
  %443 = vmatpush1.msra.mxu0 0.0
  %444 = vmatprep.subr.mxu0 0.0
  %445 = vmatpush1.msra.mxu0 0.0
  %446 = vmatprep.subr.mxu0 0.0
  %447 = vmatpush1.msra.mxu0 0.0
  %448 = vmatprep.subr.mxu0 0.0
  %449 = vmatpush1.msra.mxu0 0.0
  %450 = vmatprep.subr.mxu0 0.0
  %451 = vmatpush1.msra.mxu0 0.0
  %452 = vmatprep.subr.mxu0 0.0
  %453 = vmatpush1.msra.mxu0 0.0
  %454 = vmatprep.subr.mxu0 0.0
  %455 = vmatpush1.msra.mxu0 0.0
  %456 = vmatprep.subr.mxu0 0.0
  %457 = vmatpush1.msra.mxu0 0.0
  %458 = vmatprep.subr.mxu0 0.0
  %459 = vmatpush1.msra.mxu0 0.0
  %460 = vmatprep.subr.mxu0 0.0
  %461 = vmatpush1.msra.mxu0 0.0
  %462 = vmatprep.subr.mxu0 0.0
  %463 = vmatpush1.msra.mxu0 0.0
  %464 = vmatprep.subr.mxu0 0.0
  %465 = vmatpush1.msra.mxu0 0.0
  %466 = vmatprep.mubr.f32.mxu0 0.0
  %467 = vmatmul.mubr.f32.gmra.mrb[0].mxu0 %v329
  %v468 = vpop.f32.mrb[0].mxu0
  %v469 = vadd.f32 0.0, %v468
  %v470 = vpop.f32.mrb[0].mxu0
  %v471 = vadd.f32 0.0, %v470
  %472 = vdwg.mxu0
  %v473 = vadd.f32 %v320, %v398
  %v474 = vadd.f32 %v321, %v400
  %v475 = vadd.f32 %v322, %v469
  %v476 = vadd.f32 %v323, %v471
  %v477 = vxor.u32 %v473, 2147483648
  %v478 = vmul.f32 %v477, 1.442695
  %v479 = vpow.pop %v478
  %v480 = vadd.f32 %v479, 1.0
  %v481 = vrcp.pop %v480
  %v482 = vmul.f32 1.0, %v481
  %v483 = vxor.u32 %v474, 2147483648
  %v484 = vmul.f32 %v483, 1.442695
  %v485 = vpow.pop %v484
  %v486 = vadd.f32 %v485, 1.0
  %v487 = vrcp.pop %v486
  %v488 = vmul.f32 1.0, %v487
  %v489 = vtanh.pop %v475
  %v490 = vxor.u32 %v476, 2147483648
  %v491 = vmul.f32 %v490, 1.442695
  %v492 = vpow.pop %v491
  %v493 = vadd.f32 %v492, 1.0
  %v494 = vrcp.pop %v493
  %v495 = vmul.f32 1.0, %v494
  %v496 = vmul.f32 %v488, 0.0
  %v497 = vmul.f32 %v482, %v489
  %v498 = vadd.f32 %v496, %v497
  %v499 = vtanh.pop %v498
  %v500 = vmul.f32 %v495, %v499
  %v501 = vld [vmem:[#allocation2 + $0x20] sm:$0xff]
  %v502 = vld [vmem:[#allocation2 + $0x28] sm:$0xff]
  %v503 = vld [vmem:[#allocation2 + $0x30] sm:$0xff]
  %v504 = vld [vmem:[#allocation2 + $0x38] sm:$0xff]
  %v506 = vsel %vm56, %v500, 0
  %508 = vmatprep.subr.mxu0 %v325
  %509 = vmatpush1.msra.mxu0 %v324
  %510 = vmatprep.subr.mxu0 0.0
  %511 = vmatpush1.msra.mxu0 0.0
  %512 = vmatprep.subr.mxu0 0.0
  %513 = vmatpush1.msra.mxu0 0.0
  %514 = vmatprep.subr.mxu0 0.0
  %515 = vmatpush1.msra.mxu0 0.0
  %516 = vmatprep.subr.mxu0 0.0
  %517 = vmatpush1.msra.mxu0 0.0
  %518 = vmatprep.subr.mxu0 0.0
  %519 = vmatpush1.msra.mxu0 0.0
  %520 = vmatprep.subr.mxu0 0.0
  %521 = vmatpush1.msra.mxu0 0.0
  %522 = vmatprep.subr.mxu0 0.0
  %523 = vmatpush1.msra.mxu0 0.0
  %524 = vmatprep.subr.mxu0 0.0
  %525 = vmatpush1.msra.mxu0 0.0
  %526 = vmatprep.subr.mxu0 0.0
  %527 = vmatpush1.msra.mxu0 0.0
  %528 = vmatprep.subr.mxu0 0.0
  %529 = vmatpush1.msra.mxu0 0.0
  %530 = vmatprep.subr.mxu0 0.0
  %531 = vmatpush1.msra.mxu0 0.0
  %532 = vmatprep.subr.mxu0 0.0
  %533 = vmatpush1.msra.mxu0 0.0
  %534 = vmatprep.subr.mxu0 0.0
  %535 = vmatpush1.msra.mxu0 0.0
  %536 = vmatprep.subr.mxu0 0.0
  %537 = vmatpush1.msra.mxu0 0.0
  %538 = vmatprep.subr.mxu0 0.0
  %539 = vmatpush1.msra.mxu0 0.0
  %540 = vmatprep.subr.mxu0 0.0
  %541 = vmatpush1.msra.mxu0 0.0
  %542 = vmatprep.subr.mxu0 0.0
  %543 = vmatpush1.msra.mxu0 0.0
  %544 = vmatprep.subr.mxu0 0.0
  %545 = vmatpush1.msra.mxu0 0.0
  %546 = vmatprep.subr.mxu0 0.0
  %547 = vmatpush1.msra.mxu0 0.0
  %548 = vmatprep.subr.mxu0 0.0
  %549 = vmatpush1.msra.mxu0 0.0
  %550 = vmatprep.subr.mxu0 0.0
  %551 = vmatpush1.msra.mxu0 0.0
  %552 = vmatprep.subr.mxu0 0.0
  %553 = vmatpush1.msra.mxu0 0.0
  %554 = vmatprep.subr.mxu0 0.0
  %555 = vmatpush1.msra.mxu0 0.0
  %556 = vmatprep.subr.mxu0 0.0
  %557 = vmatpush1.msra.mxu0 0.0
  %558 = vmatprep.subr.mxu0 0.0
  %559 = vmatpush1.msra.mxu0 0.0
  %560 = vmatprep.subr.mxu0 0.0
  %561 = vmatpush1.msra.mxu0 0.0
  %562 = vmatprep.subr.mxu0 0.0
  %563 = vmatpush1.msra.mxu0 0.0
  %564 = vmatprep.subr.mxu0 0.0
  %565 = vmatpush1.msra.mxu0 0.0
  %566 = vmatprep.subr.mxu0 0.0
  %567 = vmatpush1.msra.mxu0 0.0
  %568 = vmatprep.subr.mxu0 0.0
  %569 = vmatpush1.msra.mxu0 0.0
  %570 = vmatprep.subr.mxu0 0.0
  %571 = vmatpush1.msra.mxu0 0.0
  %572 = vmatprep.mubr.f32.mxu0 0.0
  %573 = vmatmul.mubr.f32.gmra.mrb[0].mxu0 %v506
  %v574 = vpop.f32.mrb[0].mxu0
  %v575 = vadd.f32 0.0, %v574
  %v576 = vpop.f32.mrb[0].mxu0
  %v577 = vadd.f32 0.0, %v576
  %578 = vdwg.mxu0
  %579 = vmatprep.subr.mxu0 %v327
  %580 = vmatpush1.msra.mxu0 %v326
  %581 = vmatprep.subr.mxu0 0.0
  %582 = vmatpush1.msra.mxu0 0.0
  %583 = vmatprep.subr.mxu0 0.0
  %584 = vmatpush1.msra.mxu0 0.0
  %585 = vmatprep.subr.mxu0 0.0
  %586 = vmatpush1.msra.mxu0 0.0
  %587 = vmatprep.subr.mxu0 0.0
  %588 = vmatpush1.msra.mxu0 0.0
  %589 = vmatprep.subr.mxu0 0.0
  %590 = vmatpush1.msra.mxu0 0.0
  %591 = vmatprep.subr.mxu0 0.0
  %592 = vmatpush1.msra.mxu0 0.0
  %593 = vmatprep.subr.mxu0 0.0
  %594 = vmatpush1.msra.mxu0 0.0
  %595 = vmatprep.subr.mxu0 0.0
  %596 = vmatpush1.msra.mxu0 0.0
  %597 = vmatprep.subr.mxu0 0.0
  %598 = vmatpush1.msra.mxu0 0.0
  %599 = vmatprep.subr.mxu0 0.0
  %600 = vmatpush1.msra.mxu0 0.0
  %601 = vmatprep.subr.mxu0 0.0
  %602 = vmatpush1.msra.mxu0 0.0
  %603 = vmatprep.subr.mxu0 0.0
  %604 = vmatpush1.msra.mxu0 0.0
  %605 = vmatprep.subr.mxu0 0.0
  %606 = vmatpush1.msra.mxu0 0.0
  %607 = vmatprep.subr.mxu0 0.0
  %608 = vmatpush1.msra.mxu0 0.0
  %609 = vmatprep.subr.mxu0 0.0
  %610 = vmatpush1.msra.mxu0 0.0
  %611 = vmatprep.subr.mxu0 0.0
  %612 = vmatpush1.msra.mxu0 0.0
  %613 = vmatprep.subr.mxu0 0.0
  %614 = vmatpush1.msra.mxu0 0.0
  %615 = vmatprep.subr.mxu0 0.0
  %616 = vmatpush1.msra.mxu0 0.0
  %617 = vmatprep.subr.mxu0 0.0
  %618 = vmatpush1.msra.mxu0 0.0
  %619 = vmatprep.subr.mxu0 0.0
  %620 = vmatpush1.msra.mxu0 0.0
  %621 = vmatprep.subr.mxu0 0.0
  %622 = vmatpush1.msra.mxu0 0.0
  %623 = vmatprep.subr.mxu0 0.0
  %624 = vmatpush1.msra.mxu0 0.0
  %625 = vmatprep.subr.mxu0 0.0
  %626 = vmatpush1.msra.mxu0 0.0
  %627 = vmatprep.subr.mxu0 0.0
  %628 = vmatpush1.msra.mxu0 0.0
  %629 = vmatprep.subr.mxu0 0.0
  %630 = vmatpush1.msra.mxu0 0.0
  %631 = vmatprep.subr.mxu0 0.0
  %632 = vmatpush1.msra.mxu0 0.0
  %633 = vmatprep.subr.mxu0 0.0
  %634 = vmatpush1.msra.mxu0 0.0
  %635 = vmatprep.subr.mxu0 0.0
  %636 = vmatpush1.msra.mxu0 0.0
  %637 = vmatprep.subr.mxu0 0.0
  %638 = vmatpush1.msra.mxu0 0.0
  %639 = vmatprep.subr.mxu0 0.0
  %640 = vmatpush1.msra.mxu0 0.0
  %641 = vmatprep.subr.mxu0 0.0
  %642 = vmatpush1.msra.mxu0 0.0
  %643 = vmatprep.mubr.f32.mxu0 0.0
  %644 = vmatmul.mubr.f32.gmra.mrb[0].mxu0 %v506
  %v645 = vpop.f32.mrb[0].mxu0
  %v646 = vadd.f32 0.0, %v645
  %v647 = vpop.f32.mrb[0].mxu0
  %v648 = vadd.f32 0.0, %v647
  %649 = vdwg.mxu0
  %v650 = vadd.f32 %v501, %v575
  %v651 = vadd.f32 %v502, %v577
  %v652 = vadd.f32 %v503, %v646
  %v653 = vadd.f32 %v504, %v648
  %v654 = vxor.u32 %v650, 2147483648
  %v655 = vmul.f32 %v654, 1.442695
  %v656 = vpow.pop %v655
  %v657 = vadd.f32 %v656, 1.0
  %v658 = vrcp.pop %v657
  %v659 = vmul.f32 1.0, %v658
  %v660 = vxor.u32 %v651, 2147483648
  %v661 = vmul.f32 %v660, 1.442695
  %v662 = vpow.pop %v661
  %v663 = vadd.f32 %v662, 1.0
  %v664 = vrcp.pop %v663
  %v665 = vmul.f32 1.0, %v664
  %v666 = vtanh.pop %v652
  %v667 = vxor.u32 %v653, 2147483648
  %v668 = vmul.f32 %v667, 1.442695
  %v669 = vpow.pop %v668
  %v670 = vadd.f32 %v669, 1.0
  %v671 = vrcp.pop %v670
  %v672 = vmul.f32 1.0, %v671
  %v673 = vmul.f32 %v665, %v498
  %v674 = vmul.f32 %v659, %v666
  %v675 = vadd.f32 %v673, %v674
  %v676 = vtanh.pop %v675
  %v677 = vmul.f32 %v672, %v676
  %v678 = vld [vmem:[#allocation2 + $0x40] sm:$0xff]
  %v679 = vld [vmem:[#allocation2 + $0x48] sm:$0xff]
  %v680 = vld [vmem:[#allocation2 + $0x50] sm:$0xff]
  %v681 = vld [vmem:[#allocation2 + $0x58] sm:$0xff]
  %v683 = vsel %vm56, %v677, 0
  %685 = vmatprep.subr.mxu0 %v325
  %686 = vmatpush1.msra.mxu0 %v324
  %687 = vmatprep.subr.mxu0 0.0
  %688 = vmatpush1.msra.mxu0 0.0
  %689 = vmatprep.subr.mxu0 0.0
  %690 = vmatpush1.msra.mxu0 0.0
  %691 = vmatprep.subr.mxu0 0.0
  %692 = vmatpush1.msra.mxu0 0.0
  %693 = vmatprep.subr.mxu0 0.0
  %694 = vmatpush1.msra.mxu0 0.0
  %695 = vmatprep.subr.mxu0 0.0
  %696 = vmatpush1.msra.mxu0 0.0
  %697 = vmatprep.subr.mxu0 0.0
  %698 = vmatpush1.msra.mxu0 0.0
  %699 = vmatprep.subr.mxu0 0.0
  %700 = vmatpush1.msra.mxu0 0.0
  %701 = vmatprep.subr.mxu0 0.0
  %702 = vmatpush1.msra.mxu0 0.0
  %703 = vmatprep.subr.mxu0 0.0
  %704 = vmatpush1.msra.mxu0 0.0
  %705 = vmatprep.subr.mxu0 0.0
  %706 = vmatpush1.msra.mxu0 0.0
  %707 = vmatprep.subr.mxu0 0.0
  %708 = vmatpush1.msra.mxu0 0.0
  %709 = vmatprep.subr.mxu0 0.0
  %710 = vmatpush1.msra.mxu0 0.0
  %711 = vmatprep.subr.mxu0 0.0
  %712 = vmatpush1.msra.mxu0 0.0
  %713 = vmatprep.subr.mxu0 0.0
  %714 = vmatpush1.msra.mxu0 0.0
  %715 = vmatprep.subr.mxu0 0.0
  %716 = vmatpush1.msra.mxu0 0.0
  %717 = vmatprep.subr.mxu0 0.0
  %718 = vmatpush1.msra.mxu0 0.0
  %719 = vmatprep.subr.mxu0 0.0
  %720 = vmatpush1.msra.mxu0 0.0
  %721 = vmatprep.subr.mxu0 0.0
  %722 = vmatpush1.msra.mxu0 0.0
  %723 = vmatprep.subr.mxu0 0.0
  %724 = vmatpush1.msra.mxu0 0.0
  %725 = vmatprep.subr.mxu0 0.0
  %726 = vmatpush1.msra.mxu0 0.0
  %727 = vmatprep.subr.mxu0 0.0
  %728 = vmatpush1.msra.mxu0 0.0
  %729 = vmatprep.subr.mxu0 0.0
  %730 = vmatpush1.msra.mxu0 0.0
  %731 = vmatprep.subr.mxu0 0.0
  %732 = vmatpush1.msra.mxu0 0.0
  %733 = vmatprep.subr.mxu0 0.0
  %734 = vmatpush1.msra.mxu0 0.0
  %735 = vmatprep.subr.mxu0 0.0
  %736 = vmatpush1.msra.mxu0 0.0
  %737 = vmatprep.subr.mxu0 0.0
  %738 = vmatpush1.msra.mxu0 0.0
  %739 = vmatprep.subr.mxu0 0.0
  %740 = vmatpush1.msra.mxu0 0.0
  %741 = vmatprep.subr.mxu0 0.0
  %742 = vmatpush1.msra.mxu0 0.0
  %743 = vmatprep.subr.mxu0 0.0
  %744 = vmatpush1.msra.mxu0 0.0
  %745 = vmatprep.subr.mxu0 0.0
  %746 = vmatpush1.msra.mxu0 0.0
  %747 = vmatprep.subr.mxu0 0.0
  %748 = vmatpush1.msra.mxu0 0.0
  %749 = vmatprep.mubr.f32.mxu0 0.0
  %750 = vmatmul.mubr.f32.gmra.mrb[0].mxu0 %v683
  %v751 = vpop.f32.mrb[0].mxu0
  %v752 = vadd.f32 0.0, %v751
  %v753 = vpop.f32.mrb[0].mxu0
  %v754 = vadd.f32 0.0, %v753
  %755 = vdwg.mxu0
  %756 = vmatprep.subr.mxu0 %v327
  %757 = vmatpush1.msra.mxu0 %v326
  %758 = vmatprep.subr.mxu0 0.0
  %759 = vmatpush1.msra.mxu0 0.0
  %760 = vmatprep.subr.mxu0 0.0
  %761 = vmatpush1.msra.mxu0 0.0
  %762 = vmatprep.subr.mxu0 0.0
  %763 = vmatpush1.msra.mxu0 0.0
  %764 = vmatprep.subr.mxu0 0.0
  %765 = vmatpush1.msra.mxu0 0.0
  %766 = vmatprep.subr.mxu0 0.0
  %767 = vmatpush1.msra.mxu0 0.0
  %768 = vmatprep.subr.mxu0 0.0
  %769 = vmatpush1.msra.mxu0 0.0
  %770 = vmatprep.subr.mxu0 0.0
  %771 = vmatpush1.msra.mxu0 0.0
  %772 = vmatprep.subr.mxu0 0.0
  %773 = vmatpush1.msra.mxu0 0.0
  %774 = vmatprep.subr.mxu0 0.0
  %775 = vmatpush1.msra.mxu0 0.0
  %776 = vmatprep.subr.mxu0 0.0
  %777 = vmatpush1.msra.mxu0 0.0
  %778 = vmatprep.subr.mxu0 0.0
  %779 = vmatpush1.msra.mxu0 0.0
  %780 = vmatprep.subr.mxu0 0.0
  %781 = vmatpush1.msra.mxu0 0.0
  %782 = vmatprep.subr.mxu0 0.0
  %783 = vmatpush1.msra.mxu0 0.0
  %784 = vmatprep.subr.mxu0 0.0
  %785 = vmatpush1.msra.mxu0 0.0
  %786 = vmatprep.subr.mxu0 0.0
  %787 = vmatpush1.msra.mxu0 0.0
  %788 = vmatprep.subr.mxu0 0.0
  %789 = vmatpush1.msra.mxu0 0.0
  %790 = vmatprep.subr.mxu0 0.0
  %791 = vmatpush1.msra.mxu0 0.0
  %792 = vmatprep.subr.mxu0 0.0
  %793 = vmatpush1.msra.mxu0 0.0
  %794 = vmatprep.subr.mxu0 0.0
  %795 = vmatpush1.msra.mxu0 0.0
  %796 = vmatprep.subr.mxu0 0.0
  %797 = vmatpush1.msra.mxu0 0.0
  %798 = vmatprep.subr.mxu0 0.0
  %799 = vmatpush1.msra.mxu0 0.0
  %800 = vmatprep.subr.mxu0 0.0
  %801 = vmatpush1.msra.mxu0 0.0
  %802 = vmatprep.subr.mxu0 0.0
  %803 = vmatpush1.msra.mxu0 0.0
  %804 = vmatprep.subr.mxu0 0.0
  %805 = vmatpush1.msra.mxu0 0.0
  %806 = vmatprep.subr.mxu0 0.0
  %807 = vmatpush1.msra.mxu0 0.0
  %808 = vmatprep.subr.mxu0 0.0
  %809 = vmatpush1.msra.mxu0 0.0
  %810 = vmatprep.subr.mxu0 0.0
  %811 = vmatpush1.msra.mxu0 0.0
  %812 = vmatprep.subr.mxu0 0.0
  %813 = vmatpush1.msra.mxu0 0.0
  %814 = vmatprep.subr.mxu0 0.0
  %815 = vmatpush1.msra.mxu0 0.0
  %816 = vmatprep.subr.mxu0 0.0
  %817 = vmatpush1.msra.mxu0 0.0
  %818 = vmatprep.subr.mxu0 0.0
  %819 = vmatpush1.msra.mxu0 0.0
  %820 = vmatprep.mubr.f32.mxu0 0.0
  %821 = vmatmul.mubr.f32.gmra.mrb[0].mxu0 %v683
  %v822 = vpop.f32.mrb[0].mxu0
  %v823 = vadd.f32 0.0, %v822
  %v824 = vpop.f32.mrb[0].mxu0
  %v825 = vadd.f32 0.0, %v824
  %826 = vdwg.mxu0
  %v827 = vadd.f32 %v678, %v752
  %v828 = vadd.f32 %v679, %v754
  %v829 = vadd.f32 %v680, %v823
  %v830 = vadd.f32 %v681, %v825
  %v831 = vxor.u32 %v827, 2147483648
  %v832 = vmul.f32 %v831, 1.442695
  %v833 = vpow.pop %v832
  %v834 = vadd.f32 %v833, 1.0
  %v835 = vrcp.pop %v834
  %v836 = vmul.f32 1.0, %v835
  %v837 = vxor.u32 %v828, 2147483648
  %v838 = vmul.f32 %v837, 1.442695
  %v839 = vpow.pop %v838
  %v840 = vadd.f32 %v839, 1.0
  %v841 = vrcp.pop %v840
  %v842 = vmul.f32 1.0, %v841
  %v843 = vtanh.pop %v829
  %v844 = vxor.u32 %v830, 2147483648
  %v845 = vmul.f32 %v844, 1.442695
  %v846 = vpow.pop %v845
  %v847 = vadd.f32 %v846, 1.0
  %v848 = vrcp.pop %v847
  %v849 = vmul.f32 1.0, %v848
  %v850 = vmul.f32 %v842, %v675
  %v851 = vmul.f32 %v836, %v843
  %v852 = vadd.f32 %v850, %v851
  %v853 = vtanh.pop %v852
  %v854 = vmul.f32 %v849, %v853
  %v855 = vld [vmem:[#allocation2 + $0x60] sm:$0xff]
  %v856 = vld [vmem:[#allocation2 + $0x68] sm:$0xff]
  %v857 = vld [vmem:[#allocation2 + $0x70] sm:$0xff]
  %v858 = vld [vmem:[#allocation2 + $0x78] sm:$0xff]
  %v860 = vsel %vm56, %v854, 0
  %862 = vmatprep.subr.mxu0 %v325
  %863 = vmatpush1.msra.mxu0 %v324
  %864 = vmatprep.subr.mxu0 0.0
  %865 = vmatpush1.msra.mxu0 0.0
  %866 = vmatprep.subr.mxu0 0.0
  %867 = vmatpush1.msra.mxu0 0.0
  %868 = vmatprep.subr.mxu0 0.0
  %869 = vmatpush1.msra.mxu0 0.0
  %870 = vmatprep.subr.mxu0 0.0
  %871 = vmatpush1.msra.mxu0 0.0
  %872 = vmatprep.subr.mxu0 0.0
  %873 = vmatpush1.msra.mxu0 0.0
  %874 = vmatprep.subr.mxu0 0.0
  %875 = vmatpush1.msra.mxu0 0.0
  %876 = vmatprep.subr.mxu0 0.0
  %877 = vmatpush1.msra.mxu0 0.0
  %878 = vmatprep.subr.mxu0 0.0
  %879 = vmatpush1.msra.mxu0 0.0
  %880 = vmatprep.subr.mxu0 0.0
  %881 = vmatpush1.msra.mxu0 0.0
  %882 = vmatprep.subr.mxu0 0.0
  %883 = vmatpush1.msra.mxu0 0.0
  %884 = vmatprep.subr.mxu0 0.0
  %885 = vmatpush1.msra.mxu0 0.0
  %886 = vmatprep.subr.mxu0 0.0
  %887 = vmatpush1.msra.mxu0 0.0
  %888 = vmatprep.subr.mxu0 0.0
  %889 = vmatpush1.msra.mxu0 0.0
  %890 = vmatprep.subr.mxu0 0.0
  %891 = vmatpush1.msra.mxu0 0.0
  %892 = vmatprep.subr.mxu0 0.0
  %893 = vmatpush1.msra.mxu0 0.0
  %894 = vmatprep.subr.mxu0 0.0
  %895 = vmatpush1.msra.mxu0 0.0
  %896 = vmatprep.subr.mxu0 0.0
  %897 = vmatpush1.msra.mxu0 0.0
  %898 = vmatprep.subr.mxu0 0.0
  %899 = vmatpush1.msra.mxu0 0.0
  %900 = vmatprep.subr.mxu0 0.0
  %901 = vmatpush1.msra.mxu0 0.0
  %902 = vmatprep.subr.mxu0 0.0
  %903 = vmatpush1.msra.mxu0 0.0
  %904 = vmatprep.subr.mxu0 0.0
  %905 = vmatpush1.msra.mxu0 0.0
  %906 = vmatprep.subr.mxu0 0.0
  %907 = vmatpush1.msra.mxu0 0.0
  %908 = vmatprep.subr.mxu0 0.0
  %909 = vmatpush1.msra.mxu0 0.0
  %910 = vmatprep.subr.mxu0 0.0
  %911 = vmatpush1.msra.mxu0 0.0
  %912 = vmatprep.subr.mxu0 0.0
  %913 = vmatpush1.msra.mxu0 0.0
  %914 = vmatprep.subr.mxu0 0.0
  %915 = vmatpush1.msra.mxu0 0.0
  %916 = vmatprep.subr.mxu0 0.0
  %917 = vmatpush1.msra.mxu0 0.0
  %918 = vmatprep.subr.mxu0 0.0
  %919 = vmatpush1.msra.mxu0 0.0
  %920 = vmatprep.subr.mxu0 0.0
  %921 = vmatpush1.msra.mxu0 0.0
  %922 = vmatprep.subr.mxu0 0.0
  %923 = vmatpush1.msra.mxu0 0.0
  %924 = vmatprep.subr.mxu0 0.0
  %925 = vmatpush1.msra.mxu0 0.0
  %926 = vmatprep.mubr.f32.mxu0 0.0
  %927 = vmatmul.mubr.f32.gmra.mrb[0].mxu0 %v860
  %v928 = vpop.f32.mrb[0].mxu0
  %v929 = vadd.f32 0.0, %v928
  %v930 = vpop.f32.mrb[0].mxu0
  %v931 = vadd.f32 0.0, %v930
  %932 = vdwg.mxu0
  %933 = vmatprep.subr.mxu0 %v327
  %934 = vmatpush1.msra.mxu0 %v326
  %935 = vmatprep.subr.mxu0 0.0
  %936 = vmatpush1.msra.mxu0 0.0
  %937 = vmatprep.subr.mxu0 0.0
  %938 = vmatpush1.msra.mxu0 0.0
  %939 = vmatprep.subr.mxu0 0.0
  %940 = vmatpush1.msra.mxu0 0.0
  %941 = vmatprep.subr.mxu0 0.0
  %942 = vmatpush1.msra.mxu0 0.0
  %943 = vmatprep.subr.mxu0 0.0
  %944 = vmatpush1.msra.mxu0 0.0
  %945 = vmatprep.subr.mxu0 0.0
  %946 = vmatpush1.msra.mxu0 0.0
  %947 = vmatprep.subr.mxu0 0.0
  %948 = vmatpush1.msra.mxu0 0.0
  %949 = vmatprep.subr.mxu0 0.0
  %950 = vmatpush1.msra.mxu0 0.0
  %951 = vmatprep.subr.mxu0 0.0
  %952 = vmatpush1.msra.mxu0 0.0
  %953 = vmatprep.subr.mxu0 0.0
  %954 = vmatpush1.msra.mxu0 0.0
  %955 = vmatprep.subr.mxu0 0.0
  %956 = vmatpush1.msra.mxu0 0.0
  %957 = vmatprep.subr.mxu0 0.0
  %958 = vmatpush1.msra.mxu0 0.0
  %959 = vmatprep.subr.mxu0 0.0
  %960 = vmatpush1.msra.mxu0 0.0
  %961 = vmatprep.subr.mxu0 0.0
  %962 = vmatpush1.msra.mxu0 0.0
  %963 = vmatprep.subr.mxu0 0.0
  %964 = vmatpush1.msra.mxu0 0.0
  %965 = vmatprep.subr.mxu0 0.0
  %966 = vmatpush1.msra.mxu0 0.0
  %967 = vmatprep.subr.mxu0 0.0
  %968 = vmatpush1.msra.mxu0 0.0
  %969 = vmatprep.subr.mxu0 0.0
  %970 = vmatpush1.msra.mxu0 0.0
  %971 = vmatprep.subr.mxu0 0.0
  %972 = vmatpush1.msra.mxu0 0.0
  %973 = vmatprep.subr.mxu0 0.0
  %974 = vmatpush1.msra.mxu0 0.0
  %975 = vmatprep.subr.mxu0 0.0
  %976 = vmatpush1.msra.mxu0 0.0
  %977 = vmatprep.subr.mxu0 0.0
  %978 = vmatpush1.msra.mxu0 0.0
  %979 = vmatprep.subr.mxu0 0.0
  %980 = vmatpush1.msra.mxu0 0.0
  %981 = vmatprep.subr.mxu0 0.0
  %982 = vmatpush1.msra.mxu0 0.0
  %983 = vmatprep.subr.mxu0 0.0
  %984 = vmatpush1.msra.mxu0 0.0
  %985 = vmatprep.subr.mxu0 0.0
  %986 = vmatpush1.msra.mxu0 0.0
  %987 = vmatprep.subr.mxu0 0.0
  %988 = vmatpush1.msra.mxu0 0.0
  %989 = vmatprep.subr.mxu0 0.0
  %990 = vmatpush1.msra.mxu0 0.0
  %991 = vmatprep.subr.mxu0 0.0
  %992 = vmatpush1.msra.mxu0 0.0
  %993 = vmatprep.subr.mxu0 0.0
  %994 = vmatpush1.msra.mxu0 0.0
  %995 = vmatprep.subr.mxu0 0.0
  %996 = vmatpush1.msra.mxu0 0.0
  %997 = vmatprep.mubr.f32.mxu0 0.0
  %998 = vmatmul.mubr.f32.gmra.mrb[0].mxu0 %v860
  %v999 = vpop.f32.mrb[0].mxu0
  %v1000 = vadd.f32 0.0, %v999
  %v1001 = vpop.f32.mrb[0].mxu0
  %v1002 = vadd.f32 0.0, %v1001
  %1003 = vdwg.mxu0
  %v1004 = vadd.f32 %v855, %v929
  %v1005 = vadd.f32 %v856, %v931
  %v1006 = vadd.f32 %v857, %v1000
  %v1007 = vadd.f32 %v858, %v1002
  %v1008 = vxor.u32 %v1004, 2147483648
  %v1009 = vmul.f32 %v1008, 1.442695
  %v1010 = vpow.pop %v1009
  %v1011 = vadd.f32 %v1010, 1.0
  %v1012 = vrcp.pop %v1011
  %v1013 = vmul.f32 1.0, %v1012
  %v1014 = vxor.u32 %v1005, 2147483648
  %v1015 = vmul.f32 %v1014, 1.442695
  %v1016 = vpow.pop %v1015
  %v1017 = vadd.f32 %v1016, 1.0
  %v1018 = vrcp.pop %v1017
  %v1019 = vmul.f32 1.0, %v1018
  %v1020 = vtanh.pop %v1006
  %v1021 = vxor.u32 %v1007, 2147483648
  %v1022 = vmul.f32 %v1021, 1.442695
  %v1023 = vpow.pop %v1022
  %v1024 = vadd.f32 %v1023, 1.0
  %v1025 = vrcp.pop %v1024
  %v1026 = vmul.f32 1.0, %v1025
  %v1027 = vmul.f32 %v1019, %v852
  %v1028 = vmul.f32 %v1013, %v1020
  %v1029 = vadd.f32 %v1027, %v1028
  %v1030 = vtanh.pop %v1029
  %v1031 = vmul.f32 %v1026, %v1030
  %v1032 = vld [vmem:[#allocation2 + $0x80] sm:$0xff]
  %v1033 = vld [vmem:[#allocation2 + $0x88] sm:$0xff]
  %v1034 = vld [vmem:[#allocation2 + $0x90] sm:$0xff]
  %v1035 = vld [vmem:[#allocation2 + $0x98] sm:$0xff]
  %v1037 = vsel %vm56, %v1031, 0
  %1039 = vmatprep.subr.mxu0 %v325
  %1040 = vmatpush1.msra.mxu0 %v324
  %1041 = vmatprep.subr.mxu0 0.0
  %1042 = vmatpush1.msra.mxu0 0.0
  %1043 = vmatprep.subr.mxu0 0.0
  %1044 = vmatpush1.msra.mxu0 0.0
  %1045 = vmatprep.subr.mxu0 0.0
  %1046 = vmatpush1.msra.mxu0 0.0
  %1047 = vmatprep.subr.mxu0 0.0
  %1048 = vmatpush1.msra.mxu0 0.0
  %1049 = vmatprep.subr.mxu0 0.0
  %1050 = vmatpush1.msra.mxu0 0.0
  %1051 = vmatprep.subr.mxu0 0.0
  %1052 = vmatpush1.msra.mxu0 0.0
  %1053 = vmatprep.subr.mxu0 0.0
  %1054 = vmatpush1.msra.mxu0 0.0
  %1055 = vmatprep.subr.mxu0 0.0
  %1056 = vmatpush1.msra.mxu0 0.0
  %1057 = vmatprep.subr.mxu0 0.0
  %1058 = vmatpush1.msra.mxu0 0.0
  %1059 = vmatprep.subr.mxu0 0.0
  %1060 = vmatpush1.msra.mxu0 0.0
  %1061 = vmatprep.subr.mxu0 0.0
  %1062 = vmatpush1.msra.mxu0 0.0
  %1063 = vmatprep.subr.mxu0 0.0
  %1064 = vmatpush1.msra.mxu0 0.0
  %1065 = vmatprep.subr.mxu0 0.0
  %1066 = vmatpush1.msra.mxu0 0.0
  %1067 = vmatprep.subr.mxu0 0.0
  %1068 = vmatpush1.msra.mxu0 0.0
  %1069 = vmatprep.subr.mxu0 0.0
  %1070 = vmatpush1.msra.mxu0 0.0
  %1071 = vmatprep.subr.mxu0 0.0
  %1072 = vmatpush1.msra.mxu0 0.0
  %1073 = vmatprep.subr.mxu0 0.0
  %1074 = vmatpush1.msra.mxu0 0.0
  %1075 = vmatprep.subr.mxu0 0.0
  %1076 = vmatpush1.msra.mxu0 0.0
  %1077 = vmatprep.subr.mxu0 0.0
  %1078 = vmatpush1.msra.mxu0 0.0
  %1079 = vmatprep.subr.mxu0 0.0
  %1080 = vmatpush1.msra.mxu0 0.0
  %1081 = vmatprep.subr.mxu0 0.0
  %1082 = vmatpush1.msra.mxu0 0.0
  %1083 = vmatprep.subr.mxu0 0.0
  %1084 = vmatpush1.msra.mxu0 0.0
  %1085 = vmatprep.subr.mxu0 0.0
  %1086 = vmatpush1.msra.mxu0 0.0
  %1087 = vmatprep.subr.mxu0 0.0
  %1088 = vmatpush1.msra.mxu0 0.0
  %1089 = vmatprep.subr.mxu0 0.0
  %1090 = vmatpush1.msra.mxu0 0.0
  %1091 = vmatprep.subr.mxu0 0.0
  %1092 = vmatpush1.msra.mxu0 0.0
  %1093 = vmatprep.subr.mxu0 0.0
  %1094 = vmatpush1.msra.mxu0 0.0
  %1095 = vmatprep.subr.mxu0 0.0
  %1096 = vmatpush1.msra.mxu0 0.0
  %1097 = vmatprep.subr.mxu0 0.0
  %1098 = vmatpush1.msra.mxu0 0.0
  %1099 = vmatprep.subr.mxu0 0.0
  %1100 = vmatpush1.msra.mxu0 0.0
  %1101 = vmatprep.subr.mxu0 0.0
  %1102 = vmatpush1.msra.mxu0 0.0
  %1103 = vmatprep.mubr.f32.mxu0 0.0
  %1104 = vmatmul.mubr.f32.gmra.mrb[0].mxu0 %v1037
  %v1105 = vpop.f32.mrb[0].mxu0
  %v1106 = vadd.f32 0.0, %v1105
  %v1107 = vpop.f32.mrb[0].mxu0
  %v1108 = vadd.f32 0.0, %v1107
  %1109 = vdwg.mxu0
  %1110 = vmatprep.subr.mxu0 %v327
  %1111 = vmatpush1.msra.mxu0 %v326
  %1112 = vmatprep.subr.mxu0 0.0
  %1113 = vmatpush1.msra.mxu0 0.0
  %1114 = vmatprep.subr.mxu0 0.0
  %1115 = vmatpush1.msra.mxu0 0.0
  %1116 = vmatprep.subr.mxu0 0.0
  %1117 = vmatpush1.msra.mxu0 0.0
  %1118 = vmatprep.subr.mxu0 0.0
  %1119 = vmatpush1.msra.mxu0 0.0
  %1120 = vmatprep.subr.mxu0 0.0
  %1121 = vmatpush1.msra.mxu0 0.0
  %1122 = vmatprep.subr.mxu0 0.0
  %1123 = vmatpush1.msra.mxu0 0.0
  %1124 = vmatprep.subr.mxu0 0.0
  %1125 = vmatpush1.msra.mxu0 0.0
  %1126 = vmatprep.subr.mxu0 0.0
  %1127 = vmatpush1.msra.mxu0 0.0
  %1128 = vmatprep.subr.mxu0 0.0
  %1129 = vmatpush1.msra.mxu0 0.0
  %1130 = vmatprep.subr.mxu0 0.0
  %1131 = vmatpush1.msra.mxu0 0.0
  %1132 = vmatprep.subr.mxu0 0.0
  %1133 = vmatpush1.msra.mxu0 0.0
  %1134 = vmatprep.subr.mxu0 0.0
  %1135 = vmatpush1.msra.mxu0 0.0
  %1136 = vmatprep.subr.mxu0 0.0
  %1137 = vmatpush1.msra.mxu0 0.0
  %1138 = vmatprep.subr.mxu0 0.0
  %1139 = vmatpush1.msra.mxu0 0.0
  %1140 = vmatprep.subr.mxu0 0.0
  %1141 = vmatpush1.msra.mxu0 0.0
  %1142 = vmatprep.subr.mxu0 0.0
  %1143 = vmatpush1.msra.mxu0 0.0
  %1144 = vmatprep.subr.mxu0 0.0
  %1145 = vmatpush1.msra.mxu0 0.0
  %1146 = vmatprep.subr.mxu0 0.0
  %1147 = vmatpush1.msra.mxu0 0.0
  %1148 = vmatprep.subr.mxu0 0.0
  %1149 = vmatpush1.msra.mxu0 0.0
  %1150 = vmatprep.subr.mxu0 0.0
  %1151 = vmatpush1.msra.mxu0 0.0
  %1152 = vmatprep.subr.mxu0 0.0
  %1153 = vmatpush1.msra.mxu0 0.0
  %1154 = vmatprep.subr.mxu0 0.0
  %1155 = vmatpush1.msra.mxu0 0.0
  %1156 = vmatprep.subr.mxu0 0.0
  %1157 = vmatpush1.msra.mxu0 0.0
  %1158 = vmatprep.subr.mxu0 0.0
  %1159 = vmatpush1.msra.mxu0 0.0
  %1160 = vmatprep.subr.mxu0 0.0
  %1161 = vmatpush1.msra.mxu0 0.0
  %1162 = vmatprep.subr.mxu0 0.0
  %1163 = vmatpush1.msra.mxu0 0.0
  %1164 = vmatprep.subr.mxu0 0.0
  %1165 = vmatpush1.msra.mxu0 0.0
  %1166 = vmatprep.subr.mxu0 0.0
  %1167 = vmatpush1.msra.mxu0 0.0
  %1168 = vmatprep.subr.mxu0 0.0
  %1169 = vmatpush1.msra.mxu0 0.0
  %1170 = vmatprep.subr.mxu0 0.0
  %1171 = vmatpush1.msra.mxu0 0.0
  %1172 = vmatprep.subr.mxu0 0.0
  %1173 = vmatpush1.msra.mxu0 0.0
  %1174 = vmatprep.mubr.f32.mxu0 0.0
  %1175 = vmatmul.mubr.f32.gmra.mrb[0].mxu0 %v1037
  %v1176 = vpop.f32.mrb[0].mxu0
  %v1177 = vadd.f32 0.0, %v1176
  %v1178 = vpop.f32.mrb[0].mxu0
  %v1179 = vadd.f32 0.0, %v1178
  %1180 = vdwg.mxu0
  %v1181 = vadd.f32 %v1032, %v1106
  %v1182 = vadd.f32 %v1033, %v1108
  %v1183 = vadd.f32 %v1034, %v1177
  %v1184 = vadd.f32 %v1035, %v1179
  %v1185 = vxor.u32 %v1181, 2147483648
  %v1186 = vmul.f32 %v1185, 1.442695
  %v1187 = vpow.pop %v1186
  %v1188 = vadd.f32 %v1187, 1.0
  %v1189 = vrcp.pop %v1188
  %v1190 = vmul.f32 1.0, %v1189
  %v1191 = vxor.u32 %v1182, 2147483648
  %v1192 = vmul.f32 %v1191, 1.442695
  %v1193 = vpow.pop %v1192
  %v1194 = vadd.f32 %v1193, 1.0
  %v1195 = vrcp.pop %v1194
  %v1196 = vmul.f32 1.0, %v1195
  %v1197 = vtanh.pop %v1183
  %v1198 = vxor.u32 %v1184, 2147483648
  %v1199 = vmul.f32 %v1198, 1.442695
  %v1200 = vpow.pop %v1199
  %v1201 = vadd.f32 %v1200, 1.0
  %v1202 = vrcp.pop %v1201
  %v1203 = vmul.f32 1.0, %v1202
  %v1204 = vmul.f32 %v1196, %v1029
  %v1205 = vmul.f32 %v1190, %v1197
  %v1206 = vadd.f32 %v1204, %v1205
  %v1207 = vtanh.pop %v1206
  %v1208 = vmul.f32 %v1203, %v1207
  %v1209 = vld [vmem:[#allocation2 + $0xa0] sm:$0xff]
  %v1210 = vld [vmem:[#allocation2 + $0xa8] sm:$0xff]
  %v1211 = vld [vmem:[#allocation2 + $0xb0] sm:$0xff]
  %v1212 = vld [vmem:[#allocation2 + $0xb8] sm:$0xff]
  %v1214 = vsel %vm56, %v1208, 0
  %1216 = vmatprep.subr.mxu0 %v325
  %1217 = vmatpush1.msra.mxu0 %v324
  %1218 = vmatprep.subr.mxu0 0.0
  %1219 = vmatpush1.msra.mxu0 0.0
  %1220 = vmatprep.subr.mxu0 0.0
  %1221 = vmatpush1.msra.mxu0 0.0
  %1222 = vmatprep.subr.mxu0 0.0
  %1223 = vmatpush1.msra.mxu0 0.0
  %1224 = vmatprep.subr.mxu0 0.0
  %1225 = vmatpush1.msra.mxu0 0.0
  %1226 = vmatprep.subr.mxu0 0.0
  %1227 = vmatpush1.msra.mxu0 0.0
  %1228 = vmatprep.subr.mxu0 0.0
  %1229 = vmatpush1.msra.mxu0 0.0
  %1230 = vmatprep.subr.mxu0 0.0
  %1231 = vmatpush1.msra.mxu0 0.0
  %1232 = vmatprep.subr.mxu0 0.0
  %1233 = vmatpush1.msra.mxu0 0.0
  %1234 = vmatprep.subr.mxu0 0.0
  %1235 = vmatpush1.msra.mxu0 0.0
  %1236 = vmatprep.subr.mxu0 0.0
  %1237 = vmatpush1.msra.mxu0 0.0
  %1238 = vmatprep.subr.mxu0 0.0
  %1239 = vmatpush1.msra.mxu0 0.0
  %1240 = vmatprep.subr.mxu0 0.0
  %1241 = vmatpush1.msra.mxu0 0.0
  %1242 = vmatprep.subr.mxu0 0.0
  %1243 = vmatpush1.msra.mxu0 0.0
  %1244 = vmatprep.subr.mxu0 0.0
  %1245 = vmatpush1.msra.mxu0 0.0
  %1246 = vmatprep.subr.mxu0 0.0
  %1247 = vmatpush1.msra.mxu0 0.0
  %1248 = vmatprep.subr.mxu0 0.0
  %1249 = vmatpush1.msra.mxu0 0.0
  %1250 = vmatprep.subr.mxu0 0.0
  %1251 = vmatpush1.msra.mxu0 0.0
  %1252 = vmatprep.subr.mxu0 0.0
  %1253 = vmatpush1.msra.mxu0 0.0
  %1254 = vmatprep.subr.mxu0 0.0
  %1255 = vmatpush1.msra.mxu0 0.0
  %1256 = vmatprep.subr.mxu0 0.0
  %1257 = vmatpush1.msra.mxu0 0.0
  %1258 = vmatprep.subr.mxu0 0.0
  %1259 = vmatpush1.msra.mxu0 0.0
  %1260 = vmatprep.subr.mxu0 0.0
  %1261 = vmatpush1.msra.mxu0 0.0
  %1262 = vmatprep.subr.mxu0 0.0
  %1263 = vmatpush1.msra.mxu0 0.0
  %1264 = vmatprep.subr.mxu0 0.0
  %1265 = vmatpush1.msra.mxu0 0.0
  %1266 = vmatprep.subr.mxu0 0.0
  %1267 = vmatpush1.msra.mxu0 0.0
  %1268 = vmatprep.subr.mxu0 0.0
  %1269 = vmatpush1.msra.mxu0 0.0
  %1270 = vmatprep.subr.mxu0 0.0
  %1271 = vmatpush1.msra.mxu0 0.0
  %1272 = vmatprep.subr.mxu0 0.0
  %1273 = vmatpush1.msra.mxu0 0.0
  %1274 = vmatprep.subr.mxu0 0.0
  %1275 = vmatpush1.msra.mxu0 0.0
  %1276 = vmatprep.subr.mxu0 0.0
  %1277 = vmatpush1.msra.mxu0 0.0
  %1278 = vmatprep.subr.mxu0 0.0
  %1279 = vmatpush1.msra.mxu0 0.0
  %1280 = vmatprep.mubr.f32.mxu0 0.0
  %1281 = vmatmul.mubr.f32.gmra.mrb[0].mxu0 %v1214
  %v1282 = vpop.f32.mrb[0].mxu0
  %v1283 = vadd.f32 0.0, %v1282
  %v1284 = vpop.f32.mrb[0].mxu0
  %v1285 = vadd.f32 0.0, %v1284
  %1286 = vdwg.mxu0
  %1287 = vmatprep.subr.mxu0 %v327
  %1288 = vmatpush1.msra.mxu0 %v326
  %1289 = vmatprep.subr.mxu0 0.0
  %1290 = vmatpush1.msra.mxu0 0.0
  %1291 = vmatprep.subr.mxu0 0.0
  %1292 = vmatpush1.msra.mxu0 0.0
  %1293 = vmatprep.subr.mxu0 0.0
  %1294 = vmatpush1.msra.mxu0 0.0
  %1295 = vmatprep.subr.mxu0 0.0
  %1296 = vmatpush1.msra.mxu0 0.0
  %1297 = vmatprep.subr.mxu0 0.0
  %1298 = vmatpush1.msra.mxu0 0.0
  %1299 = vmatprep.subr.mxu0 0.0
  %1300 = vmatpush1.msra.mxu0 0.0
  %1301 = vmatprep.subr.mxu0 0.0
  %1302 = vmatpush1.msra.mxu0 0.0
  %1303 = vmatprep.subr.mxu0 0.0
  %1304 = vmatpush1.msra.mxu0 0.0
  %1305 = vmatprep.subr.mxu0 0.0
  %1306 = vmatpush1.msra.mxu0 0.0
  %1307 = vmatprep.subr.mxu0 0.0
  %1308 = vmatpush1.msra.mxu0 0.0
  %1309 = vmatprep.subr.mxu0 0.0
  %1310 = vmatpush1.msra.mxu0 0.0
  %1311 = vmatprep.subr.mxu0 0.0
  %1312 = vmatpush1.msra.mxu0 0.0
  %1313 = vmatprep.subr.mxu0 0.0
  %1314 = vmatpush1.msra.mxu0 0.0
  %1315 = vmatprep.subr.mxu0 0.0
  %1316 = vmatpush1.msra.mxu0 0.0
  %1317 = vmatprep.subr.mxu0 0.0
  %1318 = vmatpush1.msra.mxu0 0.0
  %1319 = vmatprep.subr.mxu0 0.0
  %1320 = vmatpush1.msra.mxu0 0.0
  %1321 = vmatprep.subr.mxu0 0.0
  %1322 = vmatpush1.msra.mxu0 0.0
  %1323 = vmatprep.subr.mxu0 0.0
  %1324 = vmatpush1.msra.mxu0 0.0
  %1325 = vmatprep.subr.mxu0 0.0
  %1326 = vmatpush1.msra.mxu0 0.0
  %1327 = vmatprep.subr.mxu0 0.0
  %1328 = vmatpush1.msra.mxu0 0.0
  %1329 = vmatprep.subr.mxu0 0.0
  %1330 = vmatpush1.msra.mxu0 0.0
  %1331 = vmatprep.subr.mxu0 0.0
  %1332 = vmatpush1.msra.mxu0 0.0
  %1333 = vmatprep.subr.mxu0 0.0
  %1334 = vmatpush1.msra.mxu0 0.0
  %1335 = vmatprep.subr.mxu0 0.0
  %1336 = vmatpush1.msra.mxu0 0.0
  %1337 = vmatprep.subr.mxu0 0.0
  %1338 = vmatpush1.msra.mxu0 0.0
  %1339 = vmatprep.subr.mxu0 0.0
  %1340 = vmatpush1.msra.mxu0 0.0
  %1341 = vmatprep.subr.mxu0 0.0
  %1342 = vmatpush1.msra.mxu0 0.0
  %1343 = vmatprep.subr.mxu0 0.0
  %1344 = vmatpush1.msra.mxu0 0.0
  %1345 = vmatprep.subr.mxu0 0.0
  %1346 = vmatpush1.msra.mxu0 0.0
  %1347 = vmatprep.subr.mxu0 0.0
  %1348 = vmatpush1.msra.mxu0 0.0
  %1349 = vmatprep.subr.mxu0 0.0
  %1350 = vmatpush1.msra.mxu0 0.0
  %1351 = vmatprep.mubr.f32.mxu0 0.0
  %1352 = vmatmul.mubr.f32.gmra.mrb[0].mxu0 %v1214
  %v1353 = vpop.f32.mrb[0].mxu0
  %v1354 = vadd.f32 0.0, %v1353
  %v1355 = vpop.f32.mrb[0].mxu0
  %v1356 = vadd.f32 0.0, %v1355
  %1357 = vdwg.mxu0
  %v1358 = vadd.f32 %v1209, %v1283
  %v1359 = vadd.f32 %v1210, %v1285
  %v1360 = vadd.f32 %v1211, %v1354
  %v1361 = vadd.f32 %v1212, %v1356
  %v1362 = vxor.u32 %v1358, 2147483648
  %v1363 = vmul.f32 %v1362, 1.442695
  %v1364 = vpow.pop %v1363
  %v1365 = vadd.f32 %v1364, 1.0
  %v1366 = vrcp.pop %v1365
  %v1367 = vmul.f32 1.0, %v1366
  %v1368 = vxor.u32 %v1359, 2147483648
  %v1369 = vmul.f32 %v1368, 1.442695
  %v1370 = vpow.pop %v1369
  %v1371 = vadd.f32 %v1370, 1.0
  %v1372 = vrcp.pop %v1371
  %v1373 = vmul.f32 1.0, %v1372
  %v1374 = vtanh.pop %v1360
  %v1375 = vxor.u32 %v1361, 2147483648
  %v1376 = vmul.f32 %v1375, 1.442695
  %v1377 = vpow.pop %v1376
  %v1378 = vadd.f32 %v1377, 1.0
  %v1379 = vrcp.pop %v1378
  %v1380 = vmul.f32 1.0, %v1379
  %v1381 = vmul.f32 %v1373, %v1206
  %v1382 = vmul.f32 %v1367, %v1374
  %v1383 = vadd.f32 %v1381, %v1382
  %v1384 = vtanh.pop %v1383
  %v1385 = vmul.f32 %v1380, %v1384
  %v1386 = vld [vmem:[#allocation2 + $0xc0] sm:$0xff]
  %v1387 = vld [vmem:[#allocation2 + $0xc8] sm:$0xff]
  %v1388 = vld [vmem:[#allocation2 + $0xd0] sm:$0xff]
  %v1389 = vld [vmem:[#allocation2 + $0xd8] sm:$0xff]
  %v1391 = vsel %vm56, %v1385, 0
  %1393 = vmatprep.subr.mxu0 %v325
  %1394 = vmatpush1.msra.mxu0 %v324
  %1395 = vmatprep.subr.mxu0 0.0
  %1396 = vmatpush1.msra.mxu0 0.0
  %1397 = vmatprep.subr.mxu0 0.0
  %1398 = vmatpush1.msra.mxu0 0.0
  %1399 = vmatprep.subr.mxu0 0.0
  %1400 = vmatpush1.msra.mxu0 0.0
  %1401 = vmatprep.subr.mxu0 0.0
  %1402 = vmatpush1.msra.mxu0 0.0
  %1403 = vmatprep.subr.mxu0 0.0
  %1404 = vmatpush1.msra.mxu0 0.0
  %1405 = vmatprep.subr.mxu0 0.0
  %1406 = vmatpush1.msra.mxu0 0.0
  %1407 = vmatprep.subr.mxu0 0.0
  %1408 = vmatpush1.msra.mxu0 0.0
  %1409 = vmatprep.subr.mxu0 0.0
  %1410 = vmatpush1.msra.mxu0 0.0
  %1411 = vmatprep.subr.mxu0 0.0
  %1412 = vmatpush1.msra.mxu0 0.0
  %1413 = vmatprep.subr.mxu0 0.0
  %1414 = vmatpush1.msra.mxu0 0.0
  %1415 = vmatprep.subr.mxu0 0.0
  %1416 = vmatpush1.msra.mxu0 0.0
  %1417 = vmatprep.subr.mxu0 0.0
  %1418 = vmatpush1.msra.mxu0 0.0
  %1419 = vmatprep.subr.mxu0 0.0
  %1420 = vmatpush1.msra.mxu0 0.0
  %1421 = vmatprep.subr.mxu0 0.0
  %1422 = vmatpush1.msra.mxu0 0.0
  %1423 = vmatprep.subr.mxu0 0.0
  %1424 = vmatpush1.msra.mxu0 0.0
  %1425 = vmatprep.subr.mxu0 0.0
  %1426 = vmatpush1.msra.mxu0 0.0
  %1427 = vmatprep.subr.mxu0 0.0
  %1428 = vmatpush1.msra.mxu0 0.0
  %1429 = vmatprep.subr.mxu0 0.0
  %1430 = vmatpush1.msra.mxu0 0.0
  %1431 = vmatprep.subr.mxu0 0.0
  %1432 = vmatpush1.msra.mxu0 0.0
  %1433 = vmatprep.subr.mxu0 0.0
  %1434 = vmatpush1.msra.mxu0 0.0
  %1435 = vmatprep.subr.mxu0 0.0
  %1436 = vmatpush1.msra.mxu0 0.0
  %1437 = vmatprep.subr.mxu0 0.0
  %1438 = vmatpush1.msra.mxu0 0.0
  %1439 = vmatprep.subr.mxu0 0.0
  %1440 = vmatpush1.msra.mxu0 0.0
  %1441 = vmatprep.subr.mxu0 0.0
  %1442 = vmatpush1.msra.mxu0 0.0
  %1443 = vmatprep.subr.mxu0 0.0
  %1444 = vmatpush1.msra.mxu0 0.0
  %1445 = vmatprep.subr.mxu0 0.0
  %1446 = vmatpush1.msra.mxu0 0.0
  %1447 = vmatprep.subr.mxu0 0.0
  %1448 = vmatpush1.msra.mxu0 0.0
  %1449 = vmatprep.subr.mxu0 0.0
  %1450 = vmatpush1.msra.mxu0 0.0
  %1451 = vmatprep.subr.mxu0 0.0
  %1452 = vmatpush1.msra.mxu0 0.0
  %1453 = vmatprep.subr.mxu0 0.0
  %1454 = vmatpush1.msra.mxu0 0.0
  %1455 = vmatprep.subr.mxu0 0.0
  %1456 = vmatpush1.msra.mxu0 0.0
  %1457 = vmatprep.mubr.f32.mxu0 0.0
  %1458 = vmatmul.mubr.f32.gmra.mrb[0].mxu0 %v1391
  %v1459 = vpop.f32.mrb[0].mxu0
  %v1460 = vadd.f32 0.0, %v1459
  %v1461 = vpop.f32.mrb[0].mxu0
  %v1462 = vadd.f32 0.0, %v1461
  %1463 = vdwg.mxu0
  %1464 = vmatprep.subr.mxu0 %v327
  %1465 = vmatpush1.msra.mxu0 %v326
  %1466 = vmatprep.subr.mxu0 0.0
  %1467 = vmatpush1.msra.mxu0 0.0
  %1468 = vmatprep.subr.mxu0 0.0
  %1469 = vmatpush1.msra.mxu0 0.0
  %1470 = vmatprep.subr.mxu0 0.0
  %1471 = vmatpush1.msra.mxu0 0.0
  %1472 = vmatprep.subr.mxu0 0.0
  %1473 = vmatpush1.msra.mxu0 0.0
  %1474 = vmatprep.subr.mxu0 0.0
  %1475 = vmatpush1.msra.mxu0 0.0
  %1476 = vmatprep.subr.mxu0 0.0
  %1477 = vmatpush1.msra.mxu0 0.0
  %1478 = vmatprep.subr.mxu0 0.0
  %1479 = vmatpush1.msra.mxu0 0.0
  %1480 = vmatprep.subr.mxu0 0.0
  %1481 = vmatpush1.msra.mxu0 0.0
  %1482 = vmatprep.subr.mxu0 0.0
  %1483 = vmatpush1.msra.mxu0 0.0
  %1484 = vmatprep.subr.mxu0 0.0
  %1485 = vmatpush1.msra.mxu0 0.0
  %1486 = vmatprep.subr.mxu0 0.0
  %1487 = vmatpush1.msra.mxu0 0.0
  %1488 = vmatprep.subr.mxu0 0.0
  %1489 = vmatpush1.msra.mxu0 0.0
  %1490 = vmatprep.subr.mxu0 0.0
  %1491 = vmatpush1.msra.mxu0 0.0
  %1492 = vmatprep.subr.mxu0 0.0
  %1493 = vmatpush1.msra.mxu0 0.0
  %1494 = vmatprep.subr.mxu0 0.0
  %1495 = vmatpush1.msra.mxu0 0.0
  %1496 = vmatprep.subr.mxu0 0.0
  %1497 = vmatpush1.msra.mxu0 0.0
  %1498 = vmatprep.subr.mxu0 0.0
  %1499 = vmatpush1.msra.mxu0 0.0
  %1500 = vmatprep.subr.mxu0 0.0
  %1501 = vmatpush1.msra.mxu0 0.0
  %1502 = vmatprep.subr.mxu0 0.0
  %1503 = vmatpush1.msra.mxu0 0.0
  %1504 = vmatprep.subr.mxu0 0.0
  %1505 = vmatpush1.msra.mxu0 0.0
  %1506 = vmatprep.subr.mxu0 0.0
  %1507 = vmatpush1.msra.mxu0 0.0
  %1508 = vmatprep.subr.mxu0 0.0
  %1509 = vmatpush1.msra.mxu0 0.0
  %1510 = vmatprep.subr.mxu0 0.0
  %1511 = vmatpush1.msra.mxu0 0.0
  %1512 = vmatprep.subr.mxu0 0.0
  %1513 = vmatpush1.msra.mxu0 0.0
  %1514 = vmatprep.subr.mxu0 0.0
  %1515 = vmatpush1.msra.mxu0 0.0
  %1516 = vmatprep.subr.mxu0 0.0
  %1517 = vmatpush1.msra.mxu0 0.0
  %1518 = vmatprep.subr.mxu0 0.0
  %1519 = vmatpush1.msra.mxu0 0.0
  %1520 = vmatprep.subr.mxu0 0.0
  %1521 = vmatpush1.msra.mxu0 0.0
  %1522 = vmatprep.subr.mxu0 0.0
  %1523 = vmatpush1.msra.mxu0 0.0
  %1524 = vmatprep.subr.mxu0 0.0
  %1525 = vmatpush1.msra.mxu0 0.0
  %1526 = vmatprep.subr.mxu0 0.0
  %1527 = vmatpush1.msra.mxu0 0.0
  %1528 = vmatprep.mubr.f32.mxu0 0.0
  %1529 = vmatmul.mubr.f32.gmra.mrb[0].mxu0 %v1391
  %v1530 = vpop.f32.mrb[0].mxu0
  %v1531 = vadd.f32 0.0, %v1530
  %v1532 = vpop.f32.mrb[0].mxu0
  %v1533 = vadd.f32 0.0, %v1532
  %1534 = vdwg.mxu0
  %v1535 = vadd.f32 %v1386, %v1460
  %v1536 = vadd.f32 %v1387, %v1462
  %v1537 = vadd.f32 %v1388, %v1531
  %v1538 = vadd.f32 %v1389, %v1533
  %v1539 = vxor.u32 %v1535, 2147483648
  %v1540 = vmul.f32 %v1539, 1.442695
  %v1541 = vpow.pop %v1540
  %v1542 = vadd.f32 %v1541, 1.0
  %v1543 = vrcp.pop %v1542
  %v1544 = vmul.f32 1.0, %v1543
  %v1545 = vxor.u32 %v1536, 2147483648
  %v1546 = vmul.f32 %v1545, 1.442695
  %v1547 = vpow.pop %v1546
  %v1548 = vadd.f32 %v1547, 1.0
  %v1549 = vrcp.pop %v1548
  %v1550 = vmul.f32 1.0, %v1549
  %v1551 = vtanh.pop %v1537
  %v1552 = vxor.u32 %v1538, 2147483648
  %v1553 = vmul.f32 %v1552, 1.442695
  %v1554 = vpow.pop %v1553
  %v1555 = vadd.f32 %v1554, 1.0
  %v1556 = vrcp.pop %v1555
  %v1557 = vmul.f32 1.0, %v1556
  %v1558 = vmul.f32 %v1550, %v1383
  %v1559 = vmul.f32 %v1544, %v1551
  %v1560 = vadd.f32 %v1558, %v1559
  %v1561 = vtanh.pop %v1560
  %v1562 = vmul.f32 %v1557, %v1561
  %v1563 = vld [vmem:[%s4] sm:$0xff]
  %v1564 = vld [vmem:[%s5] sm:$0x1]
  %v1566 = vlaneseq
  %v1567 = vshrl.u32 %v1566, 7
  %v1568 = vsub.s32 0, %v1567
  %v1569 = vrot.slane %v1564, %v1568
  %v1572 = vsel %vm56, %v1562, 0
  %1574 = vmatprep.subr.mxu0 0.0
  %1575 = vmatpush1.msra.mxu0 %v1563
  %1576 = vmatprep.subr.mxu0 0.0
  %1577 = vmatpush1.msra.mxu0 0.0
  %1578 = vmatprep.subr.mxu0 0.0
  %1579 = vmatpush1.msra.mxu0 0.0
  %1580 = vmatprep.subr.mxu0 0.0
  %1581 = vmatpush1.msra.mxu0 0.0
  %1582 = vmatprep.subr.mxu0 0.0
  %1583 = vmatpush1.msra.mxu0 0.0
  %1584 = vmatprep.subr.mxu0 0.0
  %1585 = vmatpush1.msra.mxu0 0.0
  %1586 = vmatprep.subr.mxu0 0.0
  %1587 = vmatpush1.msra.mxu0 0.0
  %1588 = vmatprep.subr.mxu0 0.0
  %1589 = vmatpush1.msra.mxu0 0.0
  %1590 = vmatprep.subr.mxu0 0.0
  %1591 = vmatpush1.msra.mxu0 0.0
  %1592 = vmatprep.subr.mxu0 0.0
  %1593 = vmatpush1.msra.mxu0 0.0
  %1594 = vmatprep.subr.mxu0 0.0
  %1595 = vmatpush1.msra.mxu0 0.0
  %1596 = vmatprep.subr.mxu0 0.0
  %1597 = vmatpush1.msra.mxu0 0.0
  %1598 = vmatprep.subr.mxu0 0.0
  %1599 = vmatpush1.msra.mxu0 0.0
  %1600 = vmatprep.subr.mxu0 0.0
  %1601 = vmatpush1.msra.mxu0 0.0
  %1602 = vmatprep.subr.mxu0 0.0
  %1603 = vmatpush1.msra.mxu0 0.0
  %1604 = vmatprep.subr.mxu0 0.0
  %1605 = vmatpush1.msra.mxu0 0.0
  %1606 = vmatprep.subr.mxu0 0.0
  %1607 = vmatpush1.msra.mxu0 0.0
  %1608 = vmatprep.subr.mxu0 0.0
  %1609 = vmatpush1.msra.mxu0 0.0
  %1610 = vmatprep.subr.mxu0 0.0
  %1611 = vmatpush1.msra.mxu0 0.0
  %1612 = vmatprep.subr.mxu0 0.0
  %1613 = vmatpush1.msra.mxu0 0.0
  %1614 = vmatprep.subr.mxu0 0.0
  %1615 = vmatpush1.msra.mxu0 0.0
  %1616 = vmatprep.subr.mxu0 0.0
  %1617 = vmatpush1.msra.mxu0 0.0
  %1618 = vmatprep.subr.mxu0 0.0
  %1619 = vmatpush1.msra.mxu0 0.0
  %1620 = vmatprep.subr.mxu0 0.0
  %1621 = vmatpush1.msra.mxu0 0.0
  %1622 = vmatprep.subr.mxu0 0.0
  %1623 = vmatpush1.msra.mxu0 0.0
  %1624 = vmatprep.subr.mxu0 0.0
  %1625 = vmatpush1.msra.mxu0 0.0
  %1626 = vmatprep.subr.mxu0 0.0
  %1627 = vmatpush1.msra.mxu0 0.0
  %1628 = vmatprep.subr.mxu0 0.0
  %1629 = vmatpush1.msra.mxu0 0.0
  %1630 = vmatprep.subr.mxu0 0.0
  %1631 = vmatpush1.msra.mxu0 0.0
  %1632 = vmatprep.subr.mxu0 0.0
  %1633 = vmatpush1.msra.mxu0 0.0
  %1634 = vmatprep.subr.mxu0 0.0
  %1635 = vmatpush1.msra.mxu0 0.0
  %1636 = vmatprep.subr.mxu0 0.0
  %1637 = vmatpush1.msra.mxu0 0.0
  %1638 = vmatprep.mubr.f32.mxu0 0.0
  %1639 = vmatmul.mubr.f32.gmra.mrb[0].mxu0 %v1572
  %v1640 = vpop.f32.mrb[0].mxu0
  %v1641 = vadd.f32 %v1569, %v1640
  %v1642 = vpop.f32.mrb[0].mxu0
  %1643 = vdwg.mxu0
  %1644 = vst [vmem:[%s6] sm:$0xff] %v1641
  // Predicated region
  $region26: #{_forward.1} parent=0 // pred_check
    _
  $region27: #{_forward.1} parent=0 // pred_check_branch
    %1646 = sbr.rel (0) target = $region29
  $region28: #{_forward.1} parent=0 // pred_region
    _
  $region29: #{_forward.1} parent=0 // pred_fallthru
    _
  // Predicated region
  $region30: #{_forward.1} parent=0 // pred_check
    _
  $region31: #{_forward.1} parent=0 // pred_check_branch
    %1648 = sbr.rel (0) target = $region33
  $region32: #{_forward.1} parent=0 // pred_region
    _
  $region33: #{_forward.1} parent=0 // pred_fallthru
    _

</llo_original>
